<compile_context>
chip_gen: v5e
topology: v5e:2x2
jax: 0.10.0
libtpu: 0.0.40
codegen_flags: <defaults>
</compile_context>

<pallas_src>
import functools

import jax
import jax.numpy as jnp
from jax import lax
from jax.experimental import pallas as pl
from jax.experimental.pallas import tpu as pltpu

BN_EPS = 1e-5


def _leaky(y, alpha):
    return jnp.where(y >= 0, y, alpha * y)


# ----------------------------- fused Pallas kernel --------------------------

def _bottleneck_kernel(x_ref, w1_ref, b1_ref, w2_ref, b2_ref, w3_ref, b3_ref,
                       o_ref, h1pad_ref, col_ref, *, alpha, dims):
    # x_ref:    (NB, D*H, W*Cin)        lane-packed channels-last input block
    # w1_ref:   (W*Cin, W*planes)       block-diagonal W-packed conv1 (BN folded)
    # w2_ref:   (9*W*planes, W*planes)  block-BANDED W-packed conv2 (kw + BN folded)
    # w3_ref:   (W*planes, W*expc)      block-diagonal W-packed conv3 (BN folded)
    # b*_ref:   (1, W*Cout)             folded BN biases, tiled over W positions
    # o_ref:    (NB, D*H, W*expc)       lane-dense output block
    # h1pad_ref:(NB, D+2, H+2, W*planes)  D/H zero-padded conv2 input scratch (VMEM)
    # col_ref:  (NB, D, H, 9*W*planes)    im2col LHS scratch (VMEM)
    NB, D, H, W, planes = dims
    DH = D * H
    M = NB * DH
    WP = W * planes
    cdt = h1pad_ref.dtype          # matmul operand / scratch dtype (f32 or bf16)

    # ---- zero ONLY the D/H halo faces (interior fully overwritten below) ----
    zd = jnp.zeros((NB, 1, H + 2, WP), cdt)
    h1pad_ref[:, 0:1, :, :] = zd
    h1pad_ref[:, D + 1:D + 2, :, :] = zd
    zh = jnp.zeros((NB, D + 2, 1, WP), cdt)
    h1pad_ref[:, :, 0:1, :] = zh
    h1pad_ref[:, :, H + 1:H + 2, :] = zh

    # ---- conv1 (1x1x1) + folded BN + LeakyReLU ------------------------------
    x = x_ref[...].reshape(M, x_ref.shape[2]).astype(jnp.float32)   # free leading collapse
    h1 = jnp.dot(x.astype(cdt), w1_ref[...],
                 preferred_element_type=jnp.float32)                # (M, W*planes)
    h1 = _leaky(h1 + b1_ref[...], alpha)

    # ---- scatter h1 into the interior of the D/H-padded scratch -------------
    h1pad_ref[:, 1:D + 1, 1:H + 1, :] = h1.reshape(NB, D, H, WP).astype(cdt)

    # ---- build im2col LHS: 9 (kd,kh) taps, plain 4-D slab copies -------------
    # kw shifts (and the W zero-padding) live inside the banded w2 weight.
    for kd in range(3):
        for kh in range(3):
            t = kd * 3 + kh
            col_ref[:, :, :, t * WP:(t + 1) * WP] = \
                h1pad_ref[:, kd:kd + D, kh:kh + H, :]

    # ---- conv2 (3x3x3, pad=1, stride=1) as ONE matmul, K = 9*W*planes --------
    col = col_ref[...].reshape(M, 9 * WP)                           # free leading collapse
    h2 = jnp.dot(col, w2_ref[...], preferred_element_type=jnp.float32)
    h2 = _leaky(h2 + b2_ref[...], alpha)                            # (M, W*planes)

    # ---- conv3 (1x1x1) + folded BN + identity residual + LeakyReLU ----------
    y = jnp.dot(h2.astype(cdt), w3_ref[...],
                preferred_element_type=jnp.float32)                 # (M, W*expc)
    y = _leaky(y + b3_ref[...] + x, alpha)

    o_ref[...] = y.reshape(NB, DH, y.shape[-1]).astype(o_ref.dtype)  # lane-dense store


# ---------------------- weight packing (done once) ---------------------------

def pack_bottleneck_params(params, W, compute_dtype=jnp.float32):
    """Fold eval-mode BatchNorm into the conv weights/biases and expand them to the
    W-packed layout.  Call once per parameter set (hoisted out of the hot path)."""
    f32 = jnp.float32

    def fold(i):
        g = params[f'bn{i}_gamma']
        b = params[f'bn{i}_beta']
        m = params[f'bn{i}_mean']
        v = params[f'bn{i}_var']
        s = g / jnp.sqrt(v + BN_EPS)
        return s, b - m * s

    s1, c1 = fold(1)
    s2, c2 = fold(2)
    s3, c3 = fold(3)

    Cin, planes = params['w1'].shape
    expc = params['w3'].shape[1]

    eye_w = jnp.eye(W, dtype=f32)
    w1s = params['w1'] * s1                      # (Cin, planes)
    w2s = params['w2'] * s2                      # (3,3,3, planes, planes), DHWIO
    w3s = params['w3'] * s3                      # (planes, expc)

    # 1x1x1 convs: block-diagonal over the packed W positions.
    w1p = jnp.einsum('kc,wv->wkvc', w1s, eye_w).reshape(W * Cin, W * planes)
    w3p = jnp.einsum('kc,wv->wkvc', w3s, eye_w).reshape(W * planes, W * expc)

    # 3x3x3 conv: kw shifts folded into a block-BANDED matrix over W
    # (w_in - w_out == kw - 1; out-of-range terms are zero == W zero-padding).
    shift = jnp.arange(W)[:, None] - jnp.arange(W)[None, :]               # w_in - w_out
    kw_onehot = (shift[..., None] == (jnp.arange(3) - 1)).astype(f32)     # (W, W, 3)
    w2band = jnp.einsum('uvw,dhwio->dhuivo', kw_onehot, w2s)  # (kd,kh,w_in,ci,w_out,co)
    w2p = w2band.reshape(9 * W * planes, W * planes)

    b1p = jnp.tile(c1, W).reshape(1, W * planes)
    b2p = jnp.tile(c2, W).reshape(1, W * planes)
    b3p = jnp.tile(c3, W).reshape(1, W * expc)

    return dict(
        w1p=w1p.astype(compute_dtype),
        w2p=w2p.astype(compute_dtype),
        w3p=w3p.astype(compute_dtype),
        b1p=b1p.astype(f32), b2p=b2p.astype(f32), b3p=b3p.astype(f32),
    )


def _default_batch_block(N):
    """Fold batch into the matmul M on single-TensorCore parts; keep one batch element
    per grid step on multi-TC parts (v7x) so the 'parallel' axis shards across cores."""
    try:
        kind = jax.devices()[0].device_kind.lower()
    except Exception:
        kind = ""
    if "v7" in kind:
        return 1
    for nb in (4, 2, 1):
        if nb <= N and N % nb == 0:
            return nb
    return 1


# --------------------------------- wrapper ----------------------------------

def bottleneck_forward(x_ncdhw, packed, lrelu_alpha, stride=1, batch_block=None,
                       compute_dtype=jnp.float32):
    # TODO(synk): stride>1 / downsample branch not implemented (identity residual only).
    assert stride == 1, "only stride=1 (identity residual) is implemented"
    N, Cin, D, H, W = x_ncdhw.shape
    planes = packed['w1p'].shape[1] // W
    expc = packed['w3p'].shape[1] // W
    assert Cin == expc, "identity residual requires in_planes == planes * expansion"
    assert packed['w2p'].shape[0] == 9 * W * planes

    NB = _default_batch_block(N) if batch_block is None else batch_block
    assert N % NB == 0

    # NCDHW -> NDHWC, lane-packed as (N, D*H, W*Cin).
    xp = jnp.transpose(x_ncdhw, (0, 2, 3, 4, 1)).reshape(N, D * H, W * Cin)

    kernel = functools.partial(_bottleneck_kernel, alpha=lrelu_alpha,
                               dims=(NB, D, H, W, planes))

    w1p, w2p, w3p = packed['w1p'], packed['w2p'], packed['w3p']
    b1p, b2p, b3p = packed['b1p'], packed['b2p'], packed['b3p']

    # Actual packed MXU work (block-diagonal/banded redundancy included) + bias bytes.
    M_rows = N * D * H
    flops = 2 * M_rows * (w1p.shape[0] * w1p.shape[1]
                          + w2p.shape[0] * w2p.shape[1]
                          + w3p.shape[0] * w3p.shape[1])
    wsize = jnp.dtype(compute_dtype).itemsize
    bytes_accessed = int(4 * M_rows * (W * Cin + W * expc)
                         + wsize * (w1p.size + w2p.size + w3p.size)
                         + 4 * (b1p.size + b2p.size + b3p.size))

    out = pl.pallas_call(
        kernel,
        out_shape=jax.ShapeDtypeStruct((N, D * H, W * expc), x_ncdhw.dtype),
        grid=(N // NB,),
        in_specs=[
            pl.BlockSpec((NB, D * H, W * Cin), lambda n: (n, 0, 0)),
            pl.BlockSpec(w1p.shape, lambda n: (0, 0)),
            pl.BlockSpec(b1p.shape, lambda n: (0, 0)),
            pl.BlockSpec(w2p.shape, lambda n: (0, 0)),
            pl.BlockSpec(b2p.shape, lambda n: (0, 0)),
            pl.BlockSpec(w3p.shape, lambda n: (0, 0)),
            pl.BlockSpec(b3p.shape, lambda n: (0, 0)),
        ],
        out_specs=pl.BlockSpec((NB, D * H, W * expc), lambda n: (n, 0, 0)),
        scratch_shapes=[
            pltpu.VMEM((NB, D + 2, H + 2, W * planes), compute_dtype),   # D/H-padded h1
            pltpu.VMEM((NB, D, H, 9 * W * planes), compute_dtype),       # im2col LHS
        ],
        compiler_params=pltpu.CompilerParams(
            dimension_semantics=("parallel",),
            vmem_limit_bytes=32 * 1024 * 1024,
        ),
        cost_estimate=pl.CostEstimate(flops=flops, transcendentals=0,
                                      bytes_accessed=bytes_accessed),
    )(xp, w1p, b1p, w2p, b2p, w3p, b3p)

    out = out.reshape(N, D, H, W, expc)
    return jnp.transpose(out, (0, 4, 1, 2, 3))  # NDHWC -> NCDHW


# ------------------------- parameters & reference ---------------------------

def init_params(key, in_planes, planes, expansion=4):
    ks = jax.random.split(key, 16)

    def conv_w(k, shape, fan_in):
        bound = 1.0 / (fan_in ** 0.5)
        return jax.random.uniform(k, shape, jnp.float32, -bound, bound)

    p = {
        'w1': conv_w(ks[0], (in_planes, planes), in_planes),              # 1x1x1 (I, O)
        'w2': conv_w(ks[1], (3, 3, 3, planes, planes), planes * 27),      # DHWIO
        'w3': conv_w(ks[2], (planes, planes * expansion), planes),        # 1x1x1 (I, O)
    }
    chans = {1: planes, 2: planes, 3: planes * expansion}
    for i in (1, 2, 3):
        c = chans[i]
        p[f'bn{i}_gamma'] = jax.random.uniform(ks[3 + i], (c,), jnp.float32, 0.5, 1.5)
        p[f'bn{i}_beta'] = 0.1 * jax.random.normal(ks[6 + i], (c,), jnp.float32)
        p[f'bn{i}_mean'] = 0.1 * jax.random.normal(ks[9 + i], (c,), jnp.float32)
        p[f'bn{i}_var'] = jax.random.uniform(ks[12 + i], (c,), jnp.float32, 0.5, 1.5)
    return p


def reference_forward(x_ncdhw, params, lrelu_alpha, stride=1):
    x = jnp.transpose(x_ncdhw, (0, 2, 3, 4, 1)).astype(jnp.float32)

    def bn(y, i):
        g = params[f'bn{i}_gamma']
        b = params[f'bn{i}_beta']
        m = params[f'bn{i}_mean']
        v = params[f'bn{i}_var']
        return (y - m) / jnp.sqrt(v + BN_EPS) * g + b

    def act(y):
        return jnp.where(y >= 0, y, lrelu_alpha * y)

    h = jnp.einsum('ndhwc,co->ndhwo', x, params['w1'])
    h = act(bn(h, 1))
    h = lax.conv_general_dilated(h, params['w2'], (stride,) * 3, ((1, 1),) * 3,
                                 dimension_numbers=('NDHWC', 'DHWIO', 'NDHWC'))
    h = act(bn(h, 2))
    h = jnp.einsum('ndhwc,co->ndhwo', h, params['w3'])
    h = act(bn(h, 3) + x)
    return jnp.transpose(h, (0, 4, 1, 2, 3))


# ----------------------------------- main -----------------------------------

if __name__ == "__main__":
    key = jax.random.PRNGKey(0)
    k_x, k_p = jax.random.split(key)

    # in_planes == planes * expansion -> identity residual (downsample=None)
    in_planes, planes, expansion = 16, 4, 4
    lrelu_alpha = 0.1
    N, D, H, W = 2, 8, 8, 8

    x = jax.random.normal(k_x, (N, in_planes, D, H, W), jnp.float32)  # PyTorch NCDHW
    params = init_params(k_p, in_planes, planes, expansion)

    # Fold BN + pack weights ONCE (hoisted out of the hot path).
    # TODO(synk): use compute_dtype=jnp.bfloat16 on v6e/v7x (loosen tolerance to ~1e-2).
    packed = pack_bottleneck_params(params, W, compute_dtype=jnp.float32)
    packed = jax.tree_util.tree_map(jax.block_until_ready, packed)

    fwd = jax.jit(functools.partial(bottleneck_forward,
                                    lrelu_alpha=lrelu_alpha, stride=1))
    out = jax.block_until_ready(fwd(x, packed))

    ref = jax.block_until_ready(reference_forward(x, params, lrelu_alpha, stride=1))
    assert out.shape == (N, planes * expansion, D, H, W), out.shape
    assert jnp.allclose(out, ref, atol=1e-4, rtol=1e-4), \
        float(jnp.max(jnp.abs(out - ref)))

    print("KERNEL_OK")
</pallas_src>

<mosaic_0001>
module attributes {stable_mosaic.version = 11 : i64} {
  func.func @_bottleneck_kernel(%arg0: i32, %arg1: memref<2x64x128xf32, #tpu.memory_space<vmem>>, %arg2: memref<128x32xf32, #tpu.memory_space<vmem>>, %arg3: memref<1x32xf32, #tpu.memory_space<vmem>>, %arg4: memref<288x32xf32, #tpu.memory_space<vmem>>, %arg5: memref<1x32xf32, #tpu.memory_space<vmem>>, %arg6: memref<32x128xf32, #tpu.memory_space<vmem>>, %arg7: memref<1x128xf32, #tpu.memory_space<vmem>>, %arg8: memref<2x64x128xf32, #tpu.memory_space<vmem>>, %arg9: memref<2x10x10x32xf32, #tpu.memory_space<vmem>>, %arg10: memref<2x8x8x288xf32, #tpu.memory_space<vmem>>) attributes {dimension_semantics = [#tpu.dimension_semantics<parallel>], iteration_bounds = array<i64: 1>, scalar_prefetch = 0 : i64, scratch_operands = 2 : i64, tpu.core_type = #tpu.core_type<tc>, window_params = [{transform_indices = @transform_0, window_bounds = array<i64: 2, 64, 128>}, {pipeline_mode = #tpu.pipeline_mode<synchronous>, transform_indices = @transform_1, window_bounds = array<i64: 128, 32>}, {pipeline_mode = #tpu.pipeline_mode<synchronous>, transform_indices = @transform_2, window_bounds = array<i64: 1, 32>}, {pipeline_mode = #tpu.pipeline_mode<synchronous>, transform_indices = @transform_3, window_bounds = array<i64: 288, 32>}, {pipeline_mode = #tpu.pipeline_mode<synchronous>, transform_indices = @transform_4, window_bounds = array<i64: 1, 32>}, {pipeline_mode = #tpu.pipeline_mode<synchronous>, transform_indices = @transform_5, window_bounds = array<i64: 32, 128>}, {pipeline_mode = #tpu.pipeline_mode<synchronous>, transform_indices = @transform_6, window_bounds = array<i64: 1, 128>}, {transform_indices = @transform_7, window_bounds = array<i64: 2, 64, 128>}]} {
    %cst = arith.constant 0.000000e+00 : f32
    %0 = vector.broadcast %cst : f32 to vector<2x1x10x32xf32>
    %c0 = arith.constant 0 : index
    %c0_0 = arith.constant 0 : index
    %c0_1 = arith.constant 0 : index
    %c0_2 = arith.constant 0 : index
    %1 = vector.load %arg9[%c0, %c0_0, %c0_1, %c0_2] : memref<2x10x10x32xf32, #tpu.memory_space<vmem>>, vector<2x1x10x32xf32>
    tpu.vector_store %arg9[%c0, %c0_0, %c0_1, %c0_2], %0 {strides = array<i32>} : memref<2x10x10x32xf32, #tpu.memory_space<vmem>>, vector<2x1x10x32xf32>,
    %c0_3 = arith.constant 0 : index
    %c9 = arith.constant 9 : index
    %c0_4 = arith.constant 0 : index
    %c0_5 = arith.constant 0 : index
    %2 = vector.load %arg9[%c0_3, %c9, %c0_4, %c0_5] : memref<2x10x10x32xf32, #tpu.memory_space<vmem>>, vector<2x1x10x32xf32>
    tpu.vector_store %arg9[%c0_3, %c9, %c0_4, %c0_5], %0 {strides = array<i32>} : memref<2x10x10x32xf32, #tpu.memory_space<vmem>>, vector<2x1x10x32xf32>,
    %cst_6 = arith.constant 0.000000e+00 : f32
    %3 = vector.broadcast %cst_6 : f32 to vector<2x10x1x32xf32>
    %c0_7 = arith.constant 0 : index
    %c0_8 = arith.constant 0 : index
    %c0_9 = arith.constant 0 : index
    %c0_10 = arith.constant 0 : index
    %4 = vector.load %arg9[%c0_7, %c0_8, %c0_9, %c0_10] : memref<2x10x10x32xf32, #tpu.memory_space<vmem>>, vector<2x10x1x32xf32>
    tpu.vector_store %arg9[%c0_7, %c0_8, %c0_9, %c0_10], %3 {strides = array<i32>} : memref<2x10x10x32xf32, #tpu.memory_space<vmem>>, vector<2x10x1x32xf32>,
    %c0_11 = arith.constant 0 : index
    %c0_12 = arith.constant 0 : index
    %c9_13 = arith.constant 9 : index
    %c0_14 = arith.constant 0 : index
    %5 = vector.load %arg9[%c0_11, %c0_12, %c9_13, %c0_14] : memref<2x10x10x32xf32, #tpu.memory_space<vmem>>, vector<2x10x1x32xf32>
    tpu.vector_store %arg9[%c0_11, %c0_12, %c9_13, %c0_14], %3 {strides = array<i32>} : memref<2x10x10x32xf32, #tpu.memory_space<vmem>>, vector<2x10x1x32xf32>,
    %c0_15 = arith.constant 0 : index
    %c0_16 = arith.constant 0 : index
    %c0_17 = arith.constant 0 : index
    %6 = vector.load %arg1[%c0_15, %c0_16, %c0_17] : memref<2x64x128xf32, #tpu.memory_space<vmem>>, vector<2x64x128xf32>
    %7 = vector.shape_cast %6 : vector<2x64x128xf32> to vector<128x128xf32>
    %c0_18 = arith.constant 0 : index
    %c0_19 = arith.constant 0 : index
    %8 = vector.load %arg2[%c0_18, %c0_19] : memref<128x32xf32, #tpu.memory_space<vmem>>, vector<128x32xf32>
    %cst_20 = arith.constant dense<0.000000e+00> : vector<128x32xf32>
    %9 = tpu.matmul %7, %8, %cst_20 {dimension_numbers = #tpu.dot_dimension_numbers<[1], [0], [0], [1], [0, 0, 1, 1], [], []>} : vector<128x128xf32>, vector<128x32xf32>, vector<128x32xf32> -> vector<128x32xf32>
    %c0_21 = arith.constant 0 : index
    %c0_22 = arith.constant 0 : index
    %10 = vector.load %arg3[%c0_21, %c0_22] : memref<1x32xf32, #tpu.memory_space<vmem>>, vector<1x32xf32>
    %11 = vector.broadcast %10 : vector<1x32xf32> to vector<128x32xf32>
    %12 = arith.addf %9, %11 : vector<128x32xf32>
    %cst_23 = arith.constant 0.000000e+00 : f32
    %13 = vector.broadcast %cst_23 : f32 to vector<128x32xf32>
    %14 = arith.cmpf oge, %12, %13 : vector<128x32xf32>
    %cst_24 = arith.constant 1.000000e-01 : f32
    %15 = vector.broadcast %cst_24 : f32 to vector<128x32xf32>
    %16 = arith.mulf %15, %12 : vector<128x32xf32>
    %17 = arith.select %14, %12, %16 : vector<128x32xi1>, vector<128x32xf32>
    %18 = vector.shape_cast %17 : vector<128x32xf32> to vector<2x8x8x32xf32>
    %c0_25 = arith.constant 0 : index
    %c1 = arith.constant 1 : index
    %c1_26 = arith.constant 1 : index
    %c0_27 = arith.constant 0 : index
    %19 = vector.load %arg9[%c0_25, %c1, %c1_26, %c0_27] : memref<2x10x10x32xf32, #tpu.memory_space<vmem>>, vector<2x8x8x32xf32>
    tpu.vector_store %arg9[%c0_25, %c1, %c1_26, %c0_27], %18 {strides = array<i32>} : memref<2x10x10x32xf32, #tpu.memory_space<vmem>>, vector<2x8x8x32xf32>,
    %c0_28 = arith.constant 0 : index
    %c0_29 = arith.constant 0 : index
    %c0_30 = arith.constant 0 : index
    %c0_31 = arith.constant 0 : index
    %20 = vector.load %arg9[%c0_28, %c0_29, %c0_30, %c0_31] : memref<2x10x10x32xf32, #tpu.memory_space<vmem>>, vector<2x8x8x32xf32>
    %c0_32 = arith.constant 0 : index
    %c0_33 = arith.constant 0 : index
    %c0_34 = arith.constant 0 : index
    %c0_35 = arith.constant 0 : index
    %21 = vector.load %arg10[%c0_32, %c0_33, %c0_34, %c0_35] : memref<2x8x8x288xf32, #tpu.memory_space<vmem>>, vector<2x8x8x32xf32>
    tpu.vector_store %arg10[%c0_32, %c0_33, %c0_34, %c0_35], %20 {strides = array<i32>} : memref<2x8x8x288xf32, #tpu.memory_space<vmem>>, vector<2x8x8x32xf32>,
    %c0_36 = arith.constant 0 : index
    %c0_37 = arith.constant 0 : index
    %c1_38 = arith.constant 1 : index
    %c0_39 = arith.constant 0 : index
    %22 = vector.load %arg9[%c0_36, %c0_37, %c1_38, %c0_39] : memref<2x10x10x32xf32, #tpu.memory_space<vmem>>, vector<2x8x8x32xf32>
    %c0_40 = arith.constant 0 : index
    %c0_41 = arith.constant 0 : index
    %c0_42 = arith.constant 0 : index
    %c32 = arith.constant 32 : index
    %23 = vector.load %arg10[%c0_40, %c0_41, %c0_42, %c32] : memref<2x8x8x288xf32, #tpu.memory_space<vmem>>, vector<2x8x8x32xf32>
    tpu.vector_store %arg10[%c0_40, %c0_41, %c0_42, %c32], %22 {strides = array<i32>} : memref<2x8x8x288xf32, #tpu.memory_space<vmem>>, vector<2x8x8x32xf32>,
    %c0_43 = arith.constant 0 : index
    %c0_44 = arith.constant 0 : index
    %c2 = arith.constant 2 : index
    %c0_45 = arith.constant 0 : index
    %24 = vector.load %arg9[%c0_43, %c0_44, %c2, %c0_45] : memref<2x10x10x32xf32, #tpu.memory_space<vmem>>, vector<2x8x8x32xf32>
    %c0_46 = arith.constant 0 : index
    %c0_47 = arith.constant 0 : index
    %c0_48 = arith.constant 0 : index
    %c64 = arith.constant 64 : index
    %25 = vector.load %arg10[%c0_46, %c0_47, %c0_48, %c64] : memref<2x8x8x288xf32, #tpu.memory_space<vmem>>, vector<2x8x8x32xf32>
    tpu.vector_store %arg10[%c0_46, %c0_47, %c0_48, %c64], %24 {strides = array<i32>} : memref<2x8x8x288xf32, #tpu.memory_space<vmem>>, vector<2x8x8x32xf32>,
    %c0_49 = arith.constant 0 : index
    %c1_50 = arith.constant 1 : index
    %c0_51 = arith.constant 0 : index
    %c0_52 = arith.constant 0 : index
    %26 = vector.load %arg9[%c0_49, %c1_50, %c0_51, %c0_52] : memref<2x10x10x32xf32, #tpu.memory_space<vmem>>, vector<2x8x8x32xf32>
    %c0_53 = arith.constant 0 : index
    %c0_54 = arith.constant 0 : index
    %c0_55 = arith.constant 0 : index
    %c96 = arith.constant 96 : index
    %27 = vector.load %arg10[%c0_53, %c0_54, %c0_55, %c96] : memref<2x8x8x288xf32, #tpu.memory_space<vmem>>, vector<2x8x8x32xf32>
    tpu.vector_store %arg10[%c0_53, %c0_54, %c0_55, %c96], %26 {strides = array<i32>} : memref<2x8x8x288xf32, #tpu.memory_space<vmem>>, vector<2x8x8x32xf32>,
    %c0_56 = arith.constant 0 : index
    %c1_57 = arith.constant 1 : index
    %c1_58 = arith.constant 1 : index
    %c0_59 = arith.constant 0 : index
    %28 = vector.load %arg9[%c0_56, %c1_57, %c1_58, %c0_59] : memref<2x10x10x32xf32, #tpu.memory_space<vmem>>, vector<2x8x8x32xf32>
    %c0_60 = arith.constant 0 : index
    %c0_61 = arith.constant 0 : index
    %c0_62 = arith.constant 0 : index
    %c128 = arith.constant 128 : index
    %29 = vector.load %arg10[%c0_60, %c0_61, %c0_62, %c128] : memref<2x8x8x288xf32, #tpu.memory_space<vmem>>, vector<2x8x8x32xf32>
    tpu.vector_store %arg10[%c0_60, %c0_61, %c0_62, %c128], %28 {strides = array<i32>} : memref<2x8x8x288xf32, #tpu.memory_space<vmem>>, vector<2x8x8x32xf32>,
    %c0_63 = arith.constant 0 : index
    %c1_64 = arith.constant 1 : index
    %c2_65 = arith.constant 2 : index
    %c0_66 = arith.constant 0 : index
    %30 = vector.load %arg9[%c0_63, %c1_64, %c2_65, %c0_66] : memref<2x10x10x32xf32, #tpu.memory_space<vmem>>, vector<2x8x8x32xf32>
    %c0_67 = arith.constant 0 : index
    %c0_68 = arith.constant 0 : index
    %c0_69 = arith.constant 0 : index
    %c160 = arith.constant 160 : index
    %31 = vector.load %arg10[%c0_67, %c0_68, %c0_69, %c160] : memref<2x8x8x288xf32, #tpu.memory_space<vmem>>, vector<2x8x8x32xf32>
    tpu.vector_store %arg10[%c0_67, %c0_68, %c0_69, %c160], %30 {strides = array<i32>} : memref<2x8x8x288xf32, #tpu.memory_space<vmem>>, vector<2x8x8x32xf32>,
    %c0_70 = arith.constant 0 : index
    %c2_71 = arith.constant 2 : index
    %c0_72 = arith.constant 0 : index
    %c0_73 = arith.constant 0 : index
    %32 = vector.load %arg9[%c0_70, %c2_71, %c0_72, %c0_73] : memref<2x10x10x32xf32, #tpu.memory_space<vmem>>, vector<2x8x8x32xf32>
    %c0_74 = arith.constant 0 : index
    %c0_75 = arith.constant 0 : index
    %c0_76 = arith.constant 0 : index
    %c192 = arith.constant 192 : index
    %33 = vector.load %arg10[%c0_74, %c0_75, %c0_76, %c192] : memref<2x8x8x288xf32, #tpu.memory_space<vmem>>, vector<2x8x8x32xf32>
    tpu.vector_store %arg10[%c0_74, %c0_75, %c0_76, %c192], %32 {strides = array<i32>} : memref<2x8x8x288xf32, #tpu.memory_space<vmem>>, vector<2x8x8x32xf32>,
    %c0_77 = arith.constant 0 : index
    %c2_78 = arith.constant 2 : index
    %c1_79 = arith.constant 1 : index
    %c0_80 = arith.constant 0 : index
    %34 = vector.load %arg9[%c0_77, %c2_78, %c1_79, %c0_80] : memref<2x10x10x32xf32, #tpu.memory_space<vmem>>, vector<2x8x8x32xf32>
    %c0_81 = arith.constant 0 : index
    %c0_82 = arith.constant 0 : index
    %c0_83 = arith.constant 0 : index
    %c224 = arith.constant 224 : index
    %35 = vector.load %arg10[%c0_81, %c0_82, %c0_83, %c224] : memref<2x8x8x288xf32, #tpu.memory_space<vmem>>, vector<2x8x8x32xf32>
    tpu.vector_store %arg10[%c0_81, %c0_82, %c0_83, %c224], %34 {strides = array<i32>} : memref<2x8x8x288xf32, #tpu.memory_space<vmem>>, vector<2x8x8x32xf32>,
    %c0_84 = arith.constant 0 : index
    %c2_85 = arith.constant 2 : index
    %c2_86 = arith.constant 2 : index
    %c0_87 = arith.constant 0 : index
    %36 = vector.load %arg9[%c0_84, %c2_85, %c2_86, %c0_87] : memref<2x10x10x32xf32, #tpu.memory_space<vmem>>, vector<2x8x8x32xf32>
    %c0_88 = arith.constant 0 : index
    %c0_89 = arith.constant 0 : index
    %c0_90 = arith.constant 0 : index
    %c256 = arith.constant 256 : index
    %37 = vector.load %arg10[%c0_88, %c0_89, %c0_90, %c256] : memref<2x8x8x288xf32, #tpu.memory_space<vmem>>, vector<2x8x8x32xf32>
    tpu.vector_store %arg10[%c0_88, %c0_89, %c0_90, %c256], %36 {strides = array<i32>} : memref<2x8x8x288xf32, #tpu.memory_space<vmem>>, vector<2x8x8x32xf32>,
    %c0_91 = arith.constant 0 : index
    %c0_92 = arith.constant 0 : index
    %c0_93 = arith.constant 0 : index
    %c0_94 = arith.constant 0 : index
    %38 = vector.load %arg10[%c0_91, %c0_92, %c0_93, %c0_94] : memref<2x8x8x288xf32, #tpu.memory_space<vmem>>, vector<2x8x8x288xf32>
    %39 = vector.shape_cast %38 : vector<2x8x8x288xf32> to vector<128x288xf32>
    %c0_95 = arith.constant 0 : index
    %c0_96 = arith.constant 0 : index
    %40 = vector.load %arg4[%c0_95, %c0_96] : memref<288x32xf32, #tpu.memory_space<vmem>>, vector<288x32xf32>
    %cst_97 = arith.constant dense<0.000000e+00> : vector<128x32xf32>
    %41 = tpu.matmul %39, %40, %cst_97 {dimension_numbers = #tpu.dot_dimension_numbers<[1], [0], [0], [1], [0, 0, 1, 1], [], []>} : vector<128x288xf32>, vector<288x32xf32>, vector<128x32xf32> -> vector<128x32xf32>
    %c0_98 = arith.constant 0 : index
    %c0_99 = arith.constant 0 : index
    %42 = vector.load %arg5[%c0_98, %c0_99] : memref<1x32xf32, #tpu.memory_space<vmem>>, vector<1x32xf32>
    %43 = vector.broadcast %42 : vector<1x32xf32> to vector<128x32xf32>
    %44 = arith.addf %41, %43 : vector<128x32xf32>
    %cst_100 = arith.constant 0.000000e+00 : f32
    %45 = vector.broadcast %cst_100 : f32 to vector<128x32xf32>
    %46 = arith.cmpf oge, %44, %45 : vector<128x32xf32>
    %cst_101 = arith.constant 1.000000e-01 : f32
    %47 = vector.broadcast %cst_101 : f32 to vector<128x32xf32>
    %48 = arith.mulf %47, %44 : vector<128x32xf32>
    %49 = arith.select %46, %44, %48 : vector<128x32xi1>, vector<128x32xf32>
    %c0_102 = arith.constant 0 : index
    %c0_103 = arith.constant 0 : index
    %50 = vector.load %arg6[%c0_102, %c0_103] : memref<32x128xf32, #tpu.memory_space<vmem>>, vector<32x128xf32>
    %cst_104 = arith.constant dense<0.000000e+00> : vector<128x128xf32>
    %51 = tpu.matmul %49, %50, %cst_104 {dimension_numbers = #tpu.dot_dimension_numbers<[1], [0], [0], [1], [0, 0, 1, 1], [], []>} : vector<128x32xf32>, vector<32x128xf32>, vector<128x128xf32> -> vector<128x128xf32>
    %c0_105 = arith.constant 0 : index
    %c0_106 = arith.constant 0 : index
    %52 = vector.load %arg7[%c0_105, %c0_106] : memref<1x128xf32, #tpu.memory_space<vmem>>, vector<1x128xf32>
    %53 = vector.broadcast %52 : vector<1x128xf32> to vector<128x128xf32>
    %54 = arith.addf %51, %53 : vector<128x128xf32>
    %55 = arith.addf %54, %7 : vector<128x128xf32>
    %cst_107 = arith.constant 0.000000e+00 : f32
    %56 = vector.broadcast %cst_107 : f32 to vector<128x128xf32>
    %57 = arith.cmpf oge, %55, %56 : vector<128x128xf32>
    %cst_108 = arith.constant 1.000000e-01 : f32
    %58 = vector.broadcast %cst_108 : f32 to vector<128x128xf32>
    %59 = arith.mulf %58, %55 : vector<128x128xf32>
    %60 = arith.select %57, %55, %59 : vector<128x128xi1>, vector<128x128xf32>
    %61 = vector.shape_cast %60 : vector<128x128xf32> to vector<2x64x128xf32>
    %c0_109 = arith.constant 0 : index
    %c0_110 = arith.constant 0 : index
    %c0_111 = arith.constant 0 : index
    %62 = vector.load %arg8[%c0_109, %c0_110, %c0_111] : memref<2x64x128xf32, #tpu.memory_space<vmem>>, vector<2x64x128xf32>
    tpu.vector_store %arg8[%c0_109, %c0_110, %c0_111], %61 {strides = array<i32>} : memref<2x64x128xf32, #tpu.memory_space<vmem>>, vector<2x64x128xf32>,
    return
  }
  func.func @transform_0(%arg0: i32) -> (i32, i32, i32) {
    %c0_i32 = arith.constant 0 : i32
    %c0_i32_0 = arith.constant 0 : i32
    %c0_i32_1 = arith.constant 0 : i32
    return %arg0, %c0_i32, %c0_i32_0 : i32, i32, i32
  }
  func.func @transform_1(%arg0: i32) -> (i32, i32) {
    %c0_i32 = arith.constant 0 : i32
    %c0_i32_0 = arith.constant 0 : i32
    %c0_i32_1 = arith.constant 0 : i32
    return %c0_i32, %c0_i32_0 : i32, i32
  }
  func.func @transform_2(%arg0: i32) -> (i32, i32) {
    %c0_i32 = arith.constant 0 : i32
    %c0_i32_0 = arith.constant 0 : i32
    %c0_i32_1 = arith.constant 0 : i32
    return %c0_i32, %c0_i32_0 : i32, i32
  }
  func.func @transform_3(%arg0: i32) -> (i32, i32) {
    %c0_i32 = arith.constant 0 : i32
    %c0_i32_0 = arith.constant 0 : i32
    %c0_i32_1 = arith.constant 0 : i32
    return %c0_i32, %c0_i32_0 : i32, i32
  }
  func.func @transform_4(%arg0: i32) -> (i32, i32) {
    %c0_i32 = arith.constant 0 : i32
    %c0_i32_0 = arith.constant 0 : i32
    %c0_i32_1 = arith.constant 0 : i32
    return %c0_i32, %c0_i32_0 : i32, i32
  }
  func.func @transform_5(%arg0: i32) -> (i32, i32) {
    %c0_i32 = arith.constant 0 : i32
    %c0_i32_0 = arith.constant 0 : i32
    %c0_i32_1 = arith.constant 0 : i32
    return %c0_i32, %c0_i32_0 : i32, i32
  }
  func.func @transform_6(%arg0: i32) -> (i32, i32) {
    %c0_i32 = arith.constant 0 : i32
    %c0_i32_0 = arith.constant 0 : i32
    %c0_i32_1 = arith.constant 0 : i32
    return %c0_i32, %c0_i32_0 : i32, i32
  }
  func.func @transform_7(%arg0: i32) -> (i32, i32, i32) {
    %c0_i32 = arith.constant 0 : i32
    %c0_i32_0 = arith.constant 0 : i32
    %c0_i32_1 = arith.constant 0 : i32
    return %arg0, %c0_i32, %c0_i32_0 : i32, i32, i32
  }
}

</mosaic_0001>

<llo_original>
// kernel: bottleneck_forward.1
$region0: #{bottleneck_forward.1}
  #allocation0 [shape = 'u32[]', space=smem, size = 0x4, offset = 0x4, fixed_abs, tag = 'smem constant byte address 0x4 - core index']
  #allocation1 [shape = 'u32[72,128]{1,0:T(1,128)}', space=vmem, size = 0x9000, scoped, tag = 'internal scratch']
  #allocation2 [shape = 'f32[2,10,10,32]{3,2,1,0:T(8,128)}', space=vmem, size = 0x28000, scoped, tag = 'scratch operand']
  #allocation3 [shape = 'f32[2,8,8,288]{3,2,1,0:T(8,128)}', space=vmem, size = 0x30000, scoped, tag = 'scratch operand']
  %s0 = inlined_call_operand.vmem [shape: f32[2,64,128], index: 0, kind: input, shape index: {}]
  %s1 = inlined_call_operand.vmem [shape: f32[128,32], index: 1, kind: input, shape index: {}]
  %s2 = inlined_call_operand.vmem [shape: f32[1,32], index: 2, kind: input, shape index: {}]
  %s3 = inlined_call_operand.vmem [shape: f32[288,32], index: 3, kind: input, shape index: {}]
  %s4 = inlined_call_operand.vmem [shape: f32[1,32], index: 4, kind: input, shape index: {}]
  %s5 = inlined_call_operand.vmem [shape: f32[32,128], index: 5, kind: input, shape index: {}]
  %s6 = inlined_call_operand.vmem [shape: f32[1,128], index: 6, kind: input, shape index: {}]
  %s7 = inlined_call_operand.vmem [shape: f32[2,64,128], index: 7, kind: output, shape index: {}]
  %s8 = sld [smem:[#allocation0]]
  $region38: #{bottleneck_forward.1} parent=0
    _
  %s10 = ssub.s32 1, %s8
  %s11 = scalar_select 0, %s10, %s8
  // Predicated region
  $region2: #{bottleneck_forward.1} parent=0 // pred_check
    _
  $region3: #{bottleneck_forward.1} parent=0 // pred_check_branch
    %13 = sbr.rel (0) target = $region5
  $region4: #{bottleneck_forward.1} parent=0 // pred_region
    _
  $region5: #{bottleneck_forward.1} parent=0 // pred_fallthru
    _
  // Predicated region
  $region6: #{bottleneck_forward.1} parent=0 // pred_check
    _
  $region7: #{bottleneck_forward.1} parent=0 // pred_check_branch
    %15 = sbr.rel (0) target = $region9
  $region8: #{bottleneck_forward.1} parent=0 // pred_region
    _
  $region9: #{bottleneck_forward.1} parent=0 // pred_fallthru
    _
  // Predicated region
  $region10: #{bottleneck_forward.1} parent=0 // pred_check
    _
  $region11: #{bottleneck_forward.1} parent=0 // pred_check_branch
    %17 = sbr.rel (0) target = $region13
  $region12: #{bottleneck_forward.1} parent=0 // pred_region
    _
  $region13: #{bottleneck_forward.1} parent=0 // pred_fallthru
    _
  // Predicated region
  $region14: #{bottleneck_forward.1} parent=0 // pred_check
    _
  $region15: #{bottleneck_forward.1} parent=0 // pred_check_branch
    %19 = sbr.rel (0) target = $region17
  $region16: #{bottleneck_forward.1} parent=0 // pred_region
    _
  $region17: #{bottleneck_forward.1} parent=0 // pred_fallthru
    _
  // Predicated region
  $region18: #{bottleneck_forward.1} parent=0 // pred_check
    _
  $region19: #{bottleneck_forward.1} parent=0 // pred_check_branch
    %21 = sbr.rel (0) target = $region21
  $region20: #{bottleneck_forward.1} parent=0 // pred_region
    _
  $region21: #{bottleneck_forward.1} parent=0 // pred_fallthru
    _
  // Predicated region
  $region22: #{bottleneck_forward.1} parent=0 // pred_check
    _
  $region23: #{bottleneck_forward.1} parent=0 // pred_check_branch
    %23 = sbr.rel (0) target = $region25
  $region24: #{bottleneck_forward.1} parent=0 // pred_region
    _
  $region25: #{bottleneck_forward.1} parent=0 // pred_fallthru
    _
  // Predicated region
  $region26: #{bottleneck_forward.1} parent=0 // pred_check
    _
  $region27: #{bottleneck_forward.1} parent=0 // pred_check_branch
    %25 = sbr.rel (0) target = $region29
  $region28: #{bottleneck_forward.1} parent=0 // pred_region
    _
  $region29: #{bottleneck_forward.1} parent=0 // pred_fallthru
    _
  %vm26 = vcmask 261120
  %27 = vst.msk [vmem:[#allocation2] sm:$0xff] %vm26, 0.0
  %vm28 = vcmask 254976
  %29 = vst.msk [vmem:[#allocation2 + $0x8] sm:$0x3] %vm28, 0.0
  %30 = vst.msk [vmem:[#allocation2 + $0xa0] sm:$0xff] %vm26, 0.0
  %31 = vst.msk [vmem:[#allocation2 + $0xa8] sm:$0x3] %vm28, 0.0
  %s32 = scalar_lea.vmem [#allocation2], 144
  %33 = vst.msk [vmem:[%s32] sm:$0xff] %vm26, 0.0
  %34 = vst.msk [vmem:[%s32 + $0x8] sm:$0x3] %vm28, 0.0
  %35 = vst.msk [vmem:[%s32 + $0xa0] sm:$0xff] %vm26, 0.0
  %36 = vst.msk [vmem:[%s32 + $0xa8] sm:$0x3] %vm28, 0.0
  %vm37 = vcmask 253952
  %38 = vst.msk [vmem:[#allocation2] sm:$0x1] %vm37, 0.0
  %39 = vst.msk [vmem:[#allocation2 + $0x10] sm:$0x1] %vm37, 0.0
  %40 = vst.msk [vmem:[#allocation2 + $0x20] sm:$0x1] %vm37, 0.0
  %41 = vst.msk [vmem:[#allocation2 + $0x30] sm:$0x1] %vm37, 0.0
  %42 = vst.msk [vmem:[#allocation2 + $0x40] sm:$0x1] %vm37, 0.0
  %43 = vst.msk [vmem:[#allocation2 + $0x50] sm:$0x1] %vm37, 0.0
  %44 = vst.msk [vmem:[#allocation2 + $0x60] sm:$0x1] %vm37, 0.0
  %45 = vst.msk [vmem:[#allocation2 + $0x70] sm:$0x1] %vm37, 0.0
  %46 = vst.msk [vmem:[#allocation2 + $0x80] sm:$0x1] %vm37, 0.0
  %47 = vst.msk [vmem:[#allocation2 + $0x90] sm:$0x1] %vm37, 0.0
  %48 = vst.msk [vmem:[#allocation2 + $0xa0] sm:$0x1] %vm37, 0.0
  %49 = vst.msk [vmem:[#allocation2 + $0xb0] sm:$0x1] %vm37, 0.0
  %50 = vst.msk [vmem:[#allocation2 + $0xc0] sm:$0x1] %vm37, 0.0
  %51 = vst.msk [vmem:[#allocation2 + $0xd0] sm:$0x1] %vm37, 0.0
  %52 = vst.msk [vmem:[#allocation2 + $0xe0] sm:$0x1] %vm37, 0.0
  %53 = vst.msk [vmem:[#allocation2 + $0xf0] sm:$0x1] %vm37, 0.0
  %54 = vst.msk [vmem:[#allocation2 + $0x100] sm:$0x1] %vm37, 0.0
  %55 = vst.msk [vmem:[#allocation2 + $0x110] sm:$0x1] %vm37, 0.0
  %56 = vst.msk [vmem:[#allocation2 + $0x120] sm:$0x1] %vm37, 0.0
  %57 = vst.msk [vmem:[#allocation2 + $0x130] sm:$0x1] %vm37, 0.0
  %58 = vst.msk [vmem:[#allocation2 + $0x9] sm:$0x1] %vm37, 0.0
  %59 = vst.msk [vmem:[#allocation2 + $0x19] sm:$0x1] %vm37, 0.0
  %60 = vst.msk [vmem:[#allocation2 + $0x29] sm:$0x1] %vm37, 0.0
  %61 = vst.msk [vmem:[#allocation2 + $0x39] sm:$0x1] %vm37, 0.0
  %62 = vst.msk [vmem:[#allocation2 + $0x49] sm:$0x1] %vm37, 0.0
  %63 = vst.msk [vmem:[#allocation2 + $0x59] sm:$0x1] %vm37, 0.0
  %64 = vst.msk [vmem:[#allocation2 + $0x69] sm:$0x1] %vm37, 0.0
  %65 = vst.msk [vmem:[#allocation2 + $0x79] sm:$0x1] %vm37, 0.0
  %66 = vst.msk [vmem:[#allocation2 + $0x89] sm:$0x1] %vm37, 0.0
  %67 = vst.msk [vmem:[#allocation2 + $0x99] sm:$0x1] %vm37, 0.0
  %68 = vst.msk [vmem:[#allocation2 + $0xa9] sm:$0x1] %vm37, 0.0
  %69 = vst.msk [vmem:[#allocation2 + $0xb9] sm:$0x1] %vm37, 0.0
  %70 = vst.msk [vmem:[#allocation2 + $0xc9] sm:$0x1] %vm37, 0.0
  %71 = vst.msk [vmem:[#allocation2 + $0xd9] sm:$0x1] %vm37, 0.0
  %72 = vst.msk [vmem:[#allocation2 + $0xe9] sm:$0x1] %vm37, 0.0
  %73 = vst.msk [vmem:[#allocation2 + $0xf9] sm:$0x1] %vm37, 0.0
  %74 = vst.msk [vmem:[#allocation2 + $0x109] sm:$0x1] %vm37, 0.0
  %75 = vst.msk [vmem:[#allocation2 + $0x119] sm:$0x1] %vm37, 0.0
  %76 = vst.msk [vmem:[#allocation2 + $0x129] sm:$0x1] %vm37, 0.0
  %77 = vst.msk [vmem:[#allocation2 + $0x139] sm:$0x1] %vm37, 0.0
  %v78 = vld [vmem:[%s0] sm:$0xff]
  %v79 = vld [vmem:[%s0 + $0x8] sm:$0xff]
  %v80 = vld [vmem:[%s0 + $0x10] sm:$0xff]
  %v81 = vld [vmem:[%s0 + $0x18] sm:$0xff]
  %v82 = vld [vmem:[%s0 + $0x20] sm:$0xff]
  %v83 = vld [vmem:[%s0 + $0x28] sm:$0xff]
  %v84 = vld [vmem:[%s0 + $0x30] sm:$0xff]
  %v85 = vld [vmem:[%s0 + $0x38] sm:$0xff]
  %v86 = vld [vmem:[%s0 + $0x40] sm:$0xff]
  %v87 = vld [vmem:[%s0 + $0x48] sm:$0xff]
  %v88 = vld [vmem:[%s0 + $0x50] sm:$0xff]
  %v89 = vld [vmem:[%s0 + $0x58] sm:$0xff]
  %v90 = vld [vmem:[%s0 + $0x60] sm:$0xff]
  %v91 = vld [vmem:[%s0 + $0x68] sm:$0xff]
  %v92 = vld [vmem:[%s0 + $0x70] sm:$0xff]
  %v93 = vld [vmem:[%s0 + $0x78] sm:$0xff]
  %v94 = vld [vmem:[%s1] sm:$0xff]
  %v95 = vld [vmem:[%s1 + $0x8] sm:$0xff]
  %v96 = vld [vmem:[%s1 + $0x10] sm:$0xff]
  %v97 = vld [vmem:[%s1 + $0x18] sm:$0xff]
  %v98 = vld [vmem:[%s1 + $0x20] sm:$0xff]
  %v99 = vld [vmem:[%s1 + $0x28] sm:$0xff]
  %v100 = vld [vmem:[%s1 + $0x30] sm:$0xff]
  %v101 = vld [vmem:[%s1 + $0x38] sm:$0xff]
  %v102 = vld [vmem:[%s1 + $0x40] sm:$0xff]
  %v103 = vld [vmem:[%s1 + $0x48] sm:$0xff]
  %v104 = vld [vmem:[%s1 + $0x50] sm:$0xff]
  %v105 = vld [vmem:[%s1 + $0x58] sm:$0xff]
  %v106 = vld [vmem:[%s1 + $0x60] sm:$0xff]
  %v107 = vld [vmem:[%s1 + $0x68] sm:$0xff]
  %v108 = vld [vmem:[%s1 + $0x70] sm:$0xff]
  %v109 = vld [vmem:[%s1 + $0x78] sm:$0xff]
  %v110 = vld [vmem:[%s2] sm:$0x1]
  %v112 = vperm.slane %v110, 0
  %114 = vmatpush.msra.mxu0 %v109
  %115 = vmatpush.msra.mxu0 %v108
  %116 = vmatpush.msra.mxu0 %v107
  %117 = vmatpush.msra.mxu0 %v106
  %118 = vmatpush.msra.mxu0 %v105
  %119 = vmatpush.msra.mxu0 %v104
  %120 = vmatpush.msra.mxu0 %v103
  %121 = vmatpush.msra.mxu0 %v102
  %122 = vmatpush.msra.mxu0 %v101
  %123 = vmatpush.msra.mxu0 %v100
  %124 = vmatpush.msra.mxu0 %v99
  %125 = vmatpush.msra.mxu0 %v98
  %126 = vmatpush.msra.mxu0 %v97
  %127 = vmatpush.msra.mxu0 %v96
  %128 = vmatpush.msra.mxu0 %v95
  %129 = vmatpush.msra.mxu0 %v94
  %130 = vmatmul.f32.gmra.mxu0 %v78
  %v131 = vpop.f32.mrf.mxu0
  %v132 = vadd.f32 %v112, %v131
  %133 = vmatmul.f32.gmra.mxu0 %v79
  %v134 = vpop.f32.mrf.mxu0
  %v135 = vadd.f32 %v112, %v134
  %136 = vmatmul.f32.gmra.mxu0 %v80
  %v137 = vpop.f32.mrf.mxu0
  %v138 = vadd.f32 %v112, %v137
  %139 = vmatmul.f32.gmra.mxu0 %v81
  %v140 = vpop.f32.mrf.mxu0
  %v141 = vadd.f32 %v112, %v140
  %142 = vmatmul.f32.gmra.mxu0 %v82
  %v143 = vpop.f32.mrf.mxu0
  %v144 = vadd.f32 %v112, %v143
  %145 = vmatmul.f32.gmra.mxu0 %v83
  %v146 = vpop.f32.mrf.mxu0
  %v147 = vadd.f32 %v112, %v146
  %148 = vmatmul.f32.gmra.mxu0 %v84
  %v149 = vpop.f32.mrf.mxu0
  %v150 = vadd.f32 %v112, %v149
  %151 = vmatmul.f32.gmra.mxu0 %v85
  %v152 = vpop.f32.mrf.mxu0
  %v153 = vadd.f32 %v112, %v152
  %154 = vmatmul.f32.gmra.mxu0 %v86
  %v155 = vpop.f32.mrf.mxu0
  %v156 = vadd.f32 %v112, %v155
  %157 = vmatmul.f32.gmra.mxu0 %v87
  %v158 = vpop.f32.mrf.mxu0
  %v159 = vadd.f32 %v112, %v158
  %160 = vmatmul.f32.gmra.mxu0 %v88
  %v161 = vpop.f32.mrf.mxu0
  %v162 = vadd.f32 %v112, %v161
  %163 = vmatmul.f32.gmra.mxu0 %v89
  %v164 = vpop.f32.mrf.mxu0
  %v165 = vadd.f32 %v112, %v164
  %166 = vmatmul.f32.gmra.mxu0 %v90
  %v167 = vpop.f32.mrf.mxu0
  %v168 = vadd.f32 %v112, %v167
  %169 = vmatmul.f32.gmra.mxu0 %v91
  %v170 = vpop.f32.mrf.mxu0
  %v171 = vadd.f32 %v112, %v170
  %172 = vmatmul.f32.gmra.mxu0 %v92
  %v173 = vpop.f32.mrf.mxu0
  %v174 = vadd.f32 %v112, %v173
  %175 = vmatmul.f32.gmra.mxu0 %v93
  %v176 = vpop.f32.mrf.mxu0
  %v177 = vadd.f32 %v112, %v176
  %178 = vdwg.mxu0
  %vm179 = vcmp.ge.f32.partialorder %v132, 0.0
  %vm180 = vcmp.ge.f32.partialorder %v135, 0.0
  %vm181 = vcmp.ge.f32.partialorder %v138, 0.0
  %vm182 = vcmp.ge.f32.partialorder %v141, 0.0
  %vm183 = vcmp.ge.f32.partialorder %v144, 0.0
  %vm184 = vcmp.ge.f32.partialorder %v147, 0.0
  %vm185 = vcmp.ge.f32.partialorder %v150, 0.0
  %vm186 = vcmp.ge.f32.partialorder %v153, 0.0
  %vm187 = vcmp.ge.f32.partialorder %v156, 0.0
  %vm188 = vcmp.ge.f32.partialorder %v159, 0.0
  %vm189 = vcmp.ge.f32.partialorder %v162, 0.0
  %vm190 = vcmp.ge.f32.partialorder %v165, 0.0
  %vm191 = vcmp.ge.f32.partialorder %v168, 0.0
  %vm192 = vcmp.ge.f32.partialorder %v171, 0.0
  %vm193 = vcmp.ge.f32.partialorder %v174, 0.0
  %vm194 = vcmp.ge.f32.partialorder %v177, 0.0
  %v195 = vmul.f32 %v132, 0.1
  %v196 = vmul.f32 %v135, 0.1
  %v197 = vmul.f32 %v138, 0.1
  %v198 = vmul.f32 %v141, 0.1
  %v199 = vmul.f32 %v144, 0.1
  %v200 = vmul.f32 %v147, 0.1
  %v201 = vmul.f32 %v150, 0.1
  %v202 = vmul.f32 %v153, 0.1
  %v203 = vmul.f32 %v156, 0.1
  %v204 = vmul.f32 %v159, 0.1
  %v205 = vmul.f32 %v162, 0.1
  %v206 = vmul.f32 %v165, 0.1
  %v207 = vmul.f32 %v168, 0.1
  %v208 = vmul.f32 %v171, 0.1
  %v209 = vmul.f32 %v174, 0.1
  %v210 = vmul.f32 %v177, 0.1
  %v211 = vsel %vm179, %v132, %v195
  %v212 = vsel %vm180, %v135, %v196
  %v213 = vsel %vm181, %v138, %v197
  %v214 = vsel %vm182, %v141, %v198
  %v215 = vsel %vm183, %v144, %v199
  %v216 = vsel %vm184, %v147, %v200
  %v217 = vsel %vm185, %v150, %v201
  %v218 = vsel %vm186, %v153, %v202
  %v219 = vsel %vm187, %v156, %v203
  %v220 = vsel %vm188, %v159, %v204
  %v221 = vsel %vm189, %v162, %v205
  %v222 = vsel %vm190, %v165, %v206
  %v223 = vsel %vm191, %v168, %v207
  %v224 = vsel %vm192, %v171, %v208
  %v225 = vsel %vm193, %v174, %v209
  %v226 = vsel %vm194, %v177, %v210
  %s227 = scalar_lea.vmem [#allocation2], 16
  %228 = vst.msk [vmem:[%s227 + $0x1] sm:$0xff] %vm26, %v211
  %229 = vst.msk [vmem:[%s227 + $0x11] sm:$0xff] %vm26, %v212
  %230 = vst.msk [vmem:[%s227 + $0x21] sm:$0xff] %vm26, %v213
  %231 = vst.msk [vmem:[%s227 + $0x31] sm:$0xff] %vm26, %v214
  %232 = vst.msk [vmem:[%s227 + $0x41] sm:$0xff] %vm26, %v215
  %233 = vst.msk [vmem:[%s227 + $0x51] sm:$0xff] %vm26, %v216
  %234 = vst.msk [vmem:[%s227 + $0x61] sm:$0xff] %vm26, %v217
  %235 = vst.msk [vmem:[%s227 + $0x71] sm:$0xff] %vm26, %v218
  %236 = vst.msk [vmem:[%s227 + $0xa1] sm:$0xff] %vm26, %v219
  %237 = vst.msk [vmem:[%s227 + $0xb1] sm:$0xff] %vm26, %v220
  %238 = vst.msk [vmem:[%s227 + $0xc1] sm:$0xff] %vm26, %v221
  %239 = vst.msk [vmem:[%s227 + $0xd1] sm:$0xff] %vm26, %v222
  %240 = vst.msk [vmem:[%s227 + $0xe1] sm:$0xff] %vm26, %v223
  %241 = vst.msk [vmem:[%s227 + $0xf1] sm:$0xff] %vm26, %v224
  %242 = vst.msk [vmem:[%s227 + $0x101] sm:$0xff] %vm26, %v225
  %243 = vst.msk [vmem:[%s227 + $0x111] sm:$0xff] %vm26, %v226
  %v244 = vld [vmem:[#allocation2] sm:$0xff]
  %v245 = vld [vmem:[#allocation2 + $0x10] sm:$0xff]
  %v246 = vld [vmem:[#allocation2 + $0x20] sm:$0xff]
  %v247 = vld [vmem:[#allocation2 + $0x30] sm:$0xff]
  %v248 = vld [vmem:[#allocation2 + $0x40] sm:$0xff]
  %v249 = vld [vmem:[#allocation2 + $0x50] sm:$0xff]
  %v250 = vld [vmem:[#allocation2 + $0x60] sm:$0xff]
  %v251 = vld [vmem:[#allocation2 + $0x70] sm:$0xff]
  %v252 = vld [vmem:[#allocation2 + $0xa0] sm:$0xff]
  %v253 = vld [vmem:[#allocation2 + $0xb0] sm:$0xff]
  %v254 = vld [vmem:[#allocation2 + $0xc0] sm:$0xff]
  %v255 = vld [vmem:[#allocation2 + $0xd0] sm:$0xff]
  %v256 = vld [vmem:[#allocation2 + $0xe0] sm:$0xff]
  %v257 = vld [vmem:[#allocation2 + $0xf0] sm:$0xff]
  %v258 = vld [vmem:[#allocation2 + $0x100] sm:$0xff]
  %v259 = vld [vmem:[#allocation2 + $0x110] sm:$0xff]
  %260 = vst.msk [vmem:[#allocation3] sm:$0xff] %vm26, %v244
  %261 = vst.msk [vmem:[#allocation3 + $0x18] sm:$0xff] %vm26, %v245
  %262 = vst.msk [vmem:[#allocation3 + $0x30] sm:$0xff] %vm26, %v246
  %263 = vst.msk [vmem:[#allocation3 + $0x48] sm:$0xff] %vm26, %v247
  %264 = vst.msk [vmem:[#allocation3 + $0x60] sm:$0xff] %vm26, %v248
  %265 = vst.msk [vmem:[#allocation3 + $0x78] sm:$0xff] %vm26, %v249
  %266 = vst.msk [vmem:[#allocation3 + $0x90] sm:$0xff] %vm26, %v250
  %267 = vst.msk [vmem:[#allocation3 + $0xa8] sm:$0xff] %vm26, %v251
  %268 = vst.msk [vmem:[#allocation3 + $0xc0] sm:$0xff] %vm26, %v252
  %269 = vst.msk [vmem:[#allocation3 + $0xd8] sm:$0xff] %vm26, %v253
  %270 = vst.msk [vmem:[#allocation3 + $0xf0] sm:$0xff] %vm26, %v254
  %271 = vst.msk [vmem:[#allocation3 + $0x108] sm:$0xff] %vm26, %v255
  %272 = vst.msk [vmem:[#allocation3 + $0x120] sm:$0xff] %vm26, %v256
  %273 = vst.msk [vmem:[#allocation3 + $0x138] sm:$0xff] %vm26, %v257
  %274 = vst.msk [vmem:[#allocation3 + $0x150] sm:$0xff] %vm26, %v258
  %275 = vst.msk [vmem:[#allocation3 + $0x168] sm:$0xff] %vm26, %v259
  %v276 = vld [vmem:[#allocation2 + $0x1] sm:$0xff]
  %v277 = vld [vmem:[#allocation2 + $0x11] sm:$0xff]
  %v278 = vld [vmem:[#allocation2 + $0x21] sm:$0xff]
  %v279 = vld [vmem:[#allocation2 + $0x31] sm:$0xff]
  %v280 = vld [vmem:[#allocation2 + $0x41] sm:$0xff]
  %v281 = vld [vmem:[#allocation2 + $0x51] sm:$0xff]
  %v282 = vld [vmem:[#allocation2 + $0x61] sm:$0xff]
  %v283 = vld [vmem:[#allocation2 + $0x71] sm:$0xff]
  %v284 = vld [vmem:[#allocation2 + $0xa1] sm:$0xff]
  %v285 = vld [vmem:[#allocation2 + $0xb1] sm:$0xff]
  %v286 = vld [vmem:[#allocation2 + $0xc1] sm:$0xff]
  %v287 = vld [vmem:[#allocation2 + $0xd1] sm:$0xff]
  %v288 = vld [vmem:[#allocation2 + $0xe1] sm:$0xff]
  %v289 = vld [vmem:[#allocation2 + $0xf1] sm:$0xff]
  %v290 = vld [vmem:[#allocation2 + $0x101] sm:$0xff]
  %v291 = vld [vmem:[#allocation2 + $0x111] sm:$0xff]
  %308 = vrot.lane.b32.xlu0 %v276, 32
  %v309 = vpop.permute.xlu0 %308
  %310 = vrot.lane.b32.xlu0 %v277, 32
  %v311 = vpop.permute.xlu0 %310
  %312 = vrot.lane.b32.xlu0 %v278, 32
  %v313 = vpop.permute.xlu0 %312
  %314 = vrot.lane.b32.xlu0 %v279, 32
  %v315 = vpop.permute.xlu0 %314
  %316 = vrot.lane.b32.xlu0 %v280, 32
  %v317 = vpop.permute.xlu0 %316
  %318 = vrot.lane.b32.xlu0 %v281, 32
  %v319 = vpop.permute.xlu0 %318
  %320 = vrot.lane.b32.xlu0 %v282, 32
  %v321 = vpop.permute.xlu0 %320
  %322 = vrot.lane.b32.xlu0 %v283, 32
  %v323 = vpop.permute.xlu0 %322
  %324 = vrot.lane.b32.xlu0 %v284, 32
  %v325 = vpop.permute.xlu0 %324
  %326 = vrot.lane.b32.xlu0 %v285, 32
  %v327 = vpop.permute.xlu0 %326
  %328 = vrot.lane.b32.xlu0 %v286, 32
  %v329 = vpop.permute.xlu0 %328
  %330 = vrot.lane.b32.xlu0 %v287, 32
  %v331 = vpop.permute.xlu0 %330
  %332 = vrot.lane.b32.xlu0 %v288, 32
  %v333 = vpop.permute.xlu0 %332
  %334 = vrot.lane.b32.xlu0 %v289, 32
  %v335 = vpop.permute.xlu0 %334
  %336 = vrot.lane.b32.xlu0 %v290, 32
  %v337 = vpop.permute.xlu0 %336
  %338 = vrot.lane.b32.xlu0 %v291, 32
  %v339 = vpop.permute.xlu0 %338
  %vm356 = vcmask 523520
  %357 = vst.msk [vmem:[#allocation3] sm:$0xff] %vm356, %v309
  %358 = vst.msk [vmem:[#allocation3 + $0x18] sm:$0xff] %vm356, %v311
  %359 = vst.msk [vmem:[#allocation3 + $0x30] sm:$0xff] %vm356, %v313
  %360 = vst.msk [vmem:[#allocation3 + $0x48] sm:$0xff] %vm356, %v315
  %361 = vst.msk [vmem:[#allocation3 + $0x60] sm:$0xff] %vm356, %v317
  %362 = vst.msk [vmem:[#allocation3 + $0x78] sm:$0xff] %vm356, %v319
  %363 = vst.msk [vmem:[#allocation3 + $0x90] sm:$0xff] %vm356, %v321
  %364 = vst.msk [vmem:[#allocation3 + $0xa8] sm:$0xff] %vm356, %v323
  %365 = vst.msk [vmem:[#allocation3 + $0xc0] sm:$0xff] %vm356, %v325
  %366 = vst.msk [vmem:[#allocation3 + $0xd8] sm:$0xff] %vm356, %v327
  %367 = vst.msk [vmem:[#allocation3 + $0xf0] sm:$0xff] %vm356, %v329
  %368 = vst.msk [vmem:[#allocation3 + $0x108] sm:$0xff] %vm356, %v331
  %369 = vst.msk [vmem:[#allocation3 + $0x120] sm:$0xff] %vm356, %v333
  %370 = vst.msk [vmem:[#allocation3 + $0x138] sm:$0xff] %vm356, %v335
  %371 = vst.msk [vmem:[#allocation3 + $0x150] sm:$0xff] %vm356, %v337
  %372 = vst.msk [vmem:[#allocation3 + $0x168] sm:$0xff] %vm356, %v339
  %v373 = vld [vmem:[#allocation2 + $0x2] sm:$0xff]
  %v374 = vld [vmem:[#allocation2 + $0x12] sm:$0xff]
  %v375 = vld [vmem:[#allocation2 + $0x22] sm:$0xff]
  %v376 = vld [vmem:[#allocation2 + $0x32] sm:$0xff]
  %v377 = vld [vmem:[#allocation2 + $0x42] sm:$0xff]
  %v378 = vld [vmem:[#allocation2 + $0x52] sm:$0xff]
  %v379 = vld [vmem:[#allocation2 + $0x62] sm:$0xff]
  %v380 = vld [vmem:[#allocation2 + $0x72] sm:$0xff]
  %v381 = vld [vmem:[#allocation2 + $0xa2] sm:$0xff]
  %v382 = vld [vmem:[#allocation2 + $0xb2] sm:$0xff]
  %v383 = vld [vmem:[#allocation2 + $0xc2] sm:$0xff]
  %v384 = vld [vmem:[#allocation2 + $0xd2] sm:$0xff]
  %v385 = vld [vmem:[#allocation2 + $0xe2] sm:$0xff]
  %v386 = vld [vmem:[#allocation2 + $0xf2] sm:$0xff]
  %v387 = vld [vmem:[#allocation2 + $0x102] sm:$0xff]
  %v388 = vld [vmem:[#allocation2 + $0x112] sm:$0xff]
  %405 = vrot.lane.b32.xlu0 %v373, 64
  %v406 = vpop.permute.xlu0 %405
  %407 = vrot.lane.b32.xlu0 %v374, 64
  %v408 = vpop.permute.xlu0 %407
  %409 = vrot.lane.b32.xlu0 %v375, 64
  %v410 = vpop.permute.xlu0 %409
  %411 = vrot.lane.b32.xlu0 %v376, 64
  %v412 = vpop.permute.xlu0 %411
  %413 = vrot.lane.b32.xlu0 %v377, 64
  %v414 = vpop.permute.xlu0 %413
  %415 = vrot.lane.b32.xlu0 %v378, 64
  %v416 = vpop.permute.xlu0 %415
  %417 = vrot.lane.b32.xlu0 %v379, 64
  %v418 = vpop.permute.xlu0 %417
  %419 = vrot.lane.b32.xlu0 %v380, 64
  %v420 = vpop.permute.xlu0 %419
  %421 = vrot.lane.b32.xlu0 %v381, 64
  %v422 = vpop.permute.xlu0 %421
  %423 = vrot.lane.b32.xlu0 %v382, 64
  %v424 = vpop.permute.xlu0 %423
  %425 = vrot.lane.b32.xlu0 %v383, 64
  %v426 = vpop.permute.xlu0 %425
  %427 = vrot.lane.b32.xlu0 %v384, 64
  %v428 = vpop.permute.xlu0 %427
  %429 = vrot.lane.b32.xlu0 %v385, 64
  %v430 = vpop.permute.xlu0 %429
  %431 = vrot.lane.b32.xlu0 %v386, 64
  %v432 = vpop.permute.xlu0 %431
  %433 = vrot.lane.b32.xlu0 %v387, 64
  %v434 = vpop.permute.xlu0 %433
  %435 = vrot.lane.b32.xlu0 %v388, 64
  %v436 = vpop.permute.xlu0 %435
  %vm453 = vcmask 785920
  %454 = vst.msk [vmem:[#allocation3] sm:$0xff] %vm453, %v406
  %455 = vst.msk [vmem:[#allocation3 + $0x18] sm:$0xff] %vm453, %v408
  %456 = vst.msk [vmem:[#allocation3 + $0x30] sm:$0xff] %vm453, %v410
  %457 = vst.msk [vmem:[#allocation3 + $0x48] sm:$0xff] %vm453, %v412
  %458 = vst.msk [vmem:[#allocation3 + $0x60] sm:$0xff] %vm453, %v414
  %459 = vst.msk [vmem:[#allocation3 + $0x78] sm:$0xff] %vm453, %v416
  %460 = vst.msk [vmem:[#allocation3 + $0x90] sm:$0xff] %vm453, %v418
  %461 = vst.msk [vmem:[#allocation3 + $0xa8] sm:$0xff] %vm453, %v420
  %462 = vst.msk [vmem:[#allocation3 + $0xc0] sm:$0xff] %vm453, %v422
  %463 = vst.msk [vmem:[#allocation3 + $0xd8] sm:$0xff] %vm453, %v424
  %464 = vst.msk [vmem:[#allocation3 + $0xf0] sm:$0xff] %vm453, %v426
  %465 = vst.msk [vmem:[#allocation3 + $0x108] sm:$0xff] %vm453, %v428
  %466 = vst.msk [vmem:[#allocation3 + $0x120] sm:$0xff] %vm453, %v430
  %467 = vst.msk [vmem:[#allocation3 + $0x138] sm:$0xff] %vm453, %v432
  %468 = vst.msk [vmem:[#allocation3 + $0x150] sm:$0xff] %vm453, %v434
  %469 = vst.msk [vmem:[#allocation3 + $0x168] sm:$0xff] %vm453, %v436
  %v470 = vld [vmem:[%s227] sm:$0xff]
  %v471 = vld [vmem:[%s227 + $0x10] sm:$0xff]
  %v472 = vld [vmem:[%s227 + $0x20] sm:$0xff]
  %v473 = vld [vmem:[%s227 + $0x30] sm:$0xff]
  %v474 = vld [vmem:[%s227 + $0x40] sm:$0xff]
  %v475 = vld [vmem:[%s227 + $0x50] sm:$0xff]
  %v476 = vld [vmem:[%s227 + $0x60] sm:$0xff]
  %v477 = vld [vmem:[%s227 + $0x70] sm:$0xff]
  %v478 = vld [vmem:[%s227 + $0xa0] sm:$0xff]
  %v479 = vld [vmem:[%s227 + $0xb0] sm:$0xff]
  %v480 = vld [vmem:[%s227 + $0xc0] sm:$0xff]
  %v481 = vld [vmem:[%s227 + $0xd0] sm:$0xff]
  %v482 = vld [vmem:[%s227 + $0xe0] sm:$0xff]
  %v483 = vld [vmem:[%s227 + $0xf0] sm:$0xff]
  %v484 = vld [vmem:[%s227 + $0x100] sm:$0xff]
  %v485 = vld [vmem:[%s227 + $0x110] sm:$0xff]
  %502 = vrot.lane.b32.xlu0 %v470, 96
  %v503 = vpop.permute.xlu0 %502
  %504 = vrot.lane.b32.xlu0 %v471, 96
  %v505 = vpop.permute.xlu0 %504
  %506 = vrot.lane.b32.xlu0 %v472, 96
  %v507 = vpop.permute.xlu0 %506
  %508 = vrot.lane.b32.xlu0 %v473, 96
  %v509 = vpop.permute.xlu0 %508
  %510 = vrot.lane.b32.xlu0 %v474, 96
  %v511 = vpop.permute.xlu0 %510
  %512 = vrot.lane.b32.xlu0 %v475, 96
  %v513 = vpop.permute.xlu0 %512
  %514 = vrot.lane.b32.xlu0 %v476, 96
  %v515 = vpop.permute.xlu0 %514
  %516 = vrot.lane.b32.xlu0 %v477, 96
  %v517 = vpop.permute.xlu0 %516
  %518 = vrot.lane.b32.xlu0 %v478, 96
  %v519 = vpop.permute.xlu0 %518
  %520 = vrot.lane.b32.xlu0 %v479, 96
  %v521 = vpop.permute.xlu0 %520
  %522 = vrot.lane.b32.xlu0 %v480, 96
  %v523 = vpop.permute.xlu0 %522
  %524 = vrot.lane.b32.xlu0 %v481, 96
  %v525 = vpop.permute.xlu0 %524
  %526 = vrot.lane.b32.xlu0 %v482, 96
  %v527 = vpop.permute.xlu0 %526
  %528 = vrot.lane.b32.xlu0 %v483, 96
  %v529 = vpop.permute.xlu0 %528
  %530 = vrot.lane.b32.xlu0 %v484, 96
  %v531 = vpop.permute.xlu0 %530
  %532 = vrot.lane.b32.xlu0 %v485, 96
  %v533 = vpop.permute.xlu0 %532
  %vm550 = vcmask 1048320
  %551 = vst.msk [vmem:[#allocation3] sm:$0xff] %vm550, %v503
  %552 = vst.msk [vmem:[#allocation3 + $0x18] sm:$0xff] %vm550, %v505
  %553 = vst.msk [vmem:[#allocation3 + $0x30] sm:$0xff] %vm550, %v507
  %554 = vst.msk [vmem:[#allocation3 + $0x48] sm:$0xff] %vm550, %v509
  %555 = vst.msk [vmem:[#allocation3 + $0x60] sm:$0xff] %vm550, %v511
  %556 = vst.msk [vmem:[#allocation3 + $0x78] sm:$0xff] %vm550, %v513
  %557 = vst.msk [vmem:[#allocation3 + $0x90] sm:$0xff] %vm550, %v515
  %558 = vst.msk [vmem:[#allocation3 + $0xa8] sm:$0xff] %vm550, %v517
  %559 = vst.msk [vmem:[#allocation3 + $0xc0] sm:$0xff] %vm550, %v519
  %560 = vst.msk [vmem:[#allocation3 + $0xd8] sm:$0xff] %vm550, %v521
  %561 = vst.msk [vmem:[#allocation3 + $0xf0] sm:$0xff] %vm550, %v523
  %562 = vst.msk [vmem:[#allocation3 + $0x108] sm:$0xff] %vm550, %v525
  %563 = vst.msk [vmem:[#allocation3 + $0x120] sm:$0xff] %vm550, %v527
  %564 = vst.msk [vmem:[#allocation3 + $0x138] sm:$0xff] %vm550, %v529
  %565 = vst.msk [vmem:[#allocation3 + $0x150] sm:$0xff] %vm550, %v531
  %566 = vst.msk [vmem:[#allocation3 + $0x168] sm:$0xff] %vm550, %v533
  %v567 = vld [vmem:[%s227 + $0x1] sm:$0xff]
  %v568 = vld [vmem:[%s227 + $0x11] sm:$0xff]
  %v569 = vld [vmem:[%s227 + $0x21] sm:$0xff]
  %v570 = vld [vmem:[%s227 + $0x31] sm:$0xff]
  %v571 = vld [vmem:[%s227 + $0x41] sm:$0xff]
  %v572 = vld [vmem:[%s227 + $0x51] sm:$0xff]
  %v573 = vld [vmem:[%s227 + $0x61] sm:$0xff]
  %v574 = vld [vmem:[%s227 + $0x71] sm:$0xff]
  %v575 = vld [vmem:[%s227 + $0xa1] sm:$0xff]
  %v576 = vld [vmem:[%s227 + $0xb1] sm:$0xff]
  %v577 = vld [vmem:[%s227 + $0xc1] sm:$0xff]
  %v578 = vld [vmem:[%s227 + $0xd1] sm:$0xff]
  %v579 = vld [vmem:[%s227 + $0xe1] sm:$0xff]
  %v580 = vld [vmem:[%s227 + $0xf1] sm:$0xff]
  %v581 = vld [vmem:[%s227 + $0x101] sm:$0xff]
  %v582 = vld [vmem:[%s227 + $0x111] sm:$0xff]
  %583 = vst.msk [vmem:[#allocation3 + $0x8] sm:$0xff] %vm26, %v567
  %584 = vst.msk [vmem:[#allocation3 + $0x20] sm:$0xff] %vm26, %v568
  %585 = vst.msk [vmem:[#allocation3 + $0x38] sm:$0xff] %vm26, %v569
  %586 = vst.msk [vmem:[#allocation3 + $0x50] sm:$0xff] %vm26, %v570
  %587 = vst.msk [vmem:[#allocation3 + $0x68] sm:$0xff] %vm26, %v571
  %588 = vst.msk [vmem:[#allocation3 + $0x80] sm:$0xff] %vm26, %v572
  %589 = vst.msk [vmem:[#allocation3 + $0x98] sm:$0xff] %vm26, %v573
  %590 = vst.msk [vmem:[#allocation3 + $0xb0] sm:$0xff] %vm26, %v574
  %591 = vst.msk [vmem:[#allocation3 + $0xc8] sm:$0xff] %vm26, %v575
  %592 = vst.msk [vmem:[#allocation3 + $0xe0] sm:$0xff] %vm26, %v576
  %593 = vst.msk [vmem:[#allocation3 + $0xf8] sm:$0xff] %vm26, %v577
  %594 = vst.msk [vmem:[#allocation3 + $0x110] sm:$0xff] %vm26, %v578
  %595 = vst.msk [vmem:[#allocation3 + $0x128] sm:$0xff] %vm26, %v579
  %596 = vst.msk [vmem:[#allocation3 + $0x140] sm:$0xff] %vm26, %v580
  %597 = vst.msk [vmem:[#allocation3 + $0x158] sm:$0xff] %vm26, %v581
  %598 = vst.msk [vmem:[#allocation3 + $0x170] sm:$0xff] %vm26, %v582
  %v599 = vld [vmem:[%s227 + $0x2] sm:$0xff]
  %v600 = vld [vmem:[%s227 + $0x12] sm:$0xff]
  %v601 = vld [vmem:[%s227 + $0x22] sm:$0xff]
  %v602 = vld [vmem:[%s227 + $0x32] sm:$0xff]
  %v603 = vld [vmem:[%s227 + $0x42] sm:$0xff]
  %v604 = vld [vmem:[%s227 + $0x52] sm:$0xff]
  %v605 = vld [vmem:[%s227 + $0x62] sm:$0xff]
  %v606 = vld [vmem:[%s227 + $0x72] sm:$0xff]
  %v607 = vld [vmem:[%s227 + $0xa2] sm:$0xff]
  %v608 = vld [vmem:[%s227 + $0xb2] sm:$0xff]
  %v609 = vld [vmem:[%s227 + $0xc2] sm:$0xff]
  %v610 = vld [vmem:[%s227 + $0xd2] sm:$0xff]
  %v611 = vld [vmem:[%s227 + $0xe2] sm:$0xff]
  %v612 = vld [vmem:[%s227 + $0xf2] sm:$0xff]
  %v613 = vld [vmem:[%s227 + $0x102] sm:$0xff]
  %v614 = vld [vmem:[%s227 + $0x112] sm:$0xff]
  %631 = vrot.lane.b32.xlu0 %v599, 32
  %v632 = vpop.permute.xlu0 %631
  %633 = vrot.lane.b32.xlu0 %v600, 32
  %v634 = vpop.permute.xlu0 %633
  %635 = vrot.lane.b32.xlu0 %v601, 32
  %v636 = vpop.permute.xlu0 %635
  %637 = vrot.lane.b32.xlu0 %v602, 32
  %v638 = vpop.permute.xlu0 %637
  %639 = vrot.lane.b32.xlu0 %v603, 32
  %v640 = vpop.permute.xlu0 %639
  %641 = vrot.lane.b32.xlu0 %v604, 32
  %v642 = vpop.permute.xlu0 %641
  %643 = vrot.lane.b32.xlu0 %v605, 32
  %v644 = vpop.permute.xlu0 %643
  %645 = vrot.lane.b32.xlu0 %v606, 32
  %v646 = vpop.permute.xlu0 %645
  %647 = vrot.lane.b32.xlu0 %v607, 32
  %v648 = vpop.permute.xlu0 %647
  %649 = vrot.lane.b32.xlu0 %v608, 32
  %v650 = vpop.permute.xlu0 %649
  %651 = vrot.lane.b32.xlu0 %v609, 32
  %v652 = vpop.permute.xlu0 %651
  %653 = vrot.lane.b32.xlu0 %v610, 32
  %v654 = vpop.permute.xlu0 %653
  %655 = vrot.lane.b32.xlu0 %v611, 32
  %v656 = vpop.permute.xlu0 %655
  %657 = vrot.lane.b32.xlu0 %v612, 32
  %v658 = vpop.permute.xlu0 %657
  %659 = vrot.lane.b32.xlu0 %v613, 32
  %v660 = vpop.permute.xlu0 %659
  %661 = vrot.lane.b32.xlu0 %v614, 32
  %v662 = vpop.permute.xlu0 %661
  %679 = vst.msk [vmem:[#allocation3 + $0x8] sm:$0xff] %vm356, %v632
  %680 = vst.msk [vmem:[#allocation3 + $0x20] sm:$0xff] %vm356, %v634
  %681 = vst.msk [vmem:[#allocation3 + $0x38] sm:$0xff] %vm356, %v636
  %682 = vst.msk [vmem:[#allocation3 + $0x50] sm:$0xff] %vm356, %v638
  %683 = vst.msk [vmem:[#allocation3 + $0x68] sm:$0xff] %vm356, %v640
  %684 = vst.msk [vmem:[#allocation3 + $0x80] sm:$0xff] %vm356, %v642
  %685 = vst.msk [vmem:[#allocation3 + $0x98] sm:$0xff] %vm356, %v644
  %686 = vst.msk [vmem:[#allocation3 + $0xb0] sm:$0xff] %vm356, %v646
  %687 = vst.msk [vmem:[#allocation3 + $0xc8] sm:$0xff] %vm356, %v648
  %688 = vst.msk [vmem:[#allocation3 + $0xe0] sm:$0xff] %vm356, %v650
  %689 = vst.msk [vmem:[#allocation3 + $0xf8] sm:$0xff] %vm356, %v652
  %690 = vst.msk [vmem:[#allocation3 + $0x110] sm:$0xff] %vm356, %v654
  %691 = vst.msk [vmem:[#allocation3 + $0x128] sm:$0xff] %vm356, %v656
  %692 = vst.msk [vmem:[#allocation3 + $0x140] sm:$0xff] %vm356, %v658
  %693 = vst.msk [vmem:[#allocation3 + $0x158] sm:$0xff] %vm356, %v660
  %694 = vst.msk [vmem:[#allocation3 + $0x170] sm:$0xff] %vm356, %v662
  %s695 = scalar_lea.vmem [#allocation2], 32
  %v696 = vld [vmem:[%s695] sm:$0xff]
  %v697 = vld [vmem:[%s695 + $0x10] sm:$0xff]
  %v698 = vld [vmem:[%s695 + $0x20] sm:$0xff]
  %v699 = vld [vmem:[%s695 + $0x30] sm:$0xff]
  %v700 = vld [vmem:[%s695 + $0x40] sm:$0xff]
  %v701 = vld [vmem:[%s695 + $0x50] sm:$0xff]
  %v702 = vld [vmem:[%s695 + $0x60] sm:$0xff]
  %v703 = vld [vmem:[%s695 + $0x70] sm:$0xff]
  %v704 = vld [vmem:[%s695 + $0xa0] sm:$0xff]
  %v705 = vld [vmem:[%s695 + $0xb0] sm:$0xff]
  %v706 = vld [vmem:[%s695 + $0xc0] sm:$0xff]
  %v707 = vld [vmem:[%s695 + $0xd0] sm:$0xff]
  %v708 = vld [vmem:[%s695 + $0xe0] sm:$0xff]
  %v709 = vld [vmem:[%s695 + $0xf0] sm:$0xff]
  %v710 = vld [vmem:[%s695 + $0x100] sm:$0xff]
  %v711 = vld [vmem:[%s695 + $0x110] sm:$0xff]
  %728 = vrot.lane.b32.xlu0 %v696, 64
  %v729 = vpop.permute.xlu0 %728
  %730 = vrot.lane.b32.xlu0 %v697, 64
  %v731 = vpop.permute.xlu0 %730
  %732 = vrot.lane.b32.xlu0 %v698, 64
  %v733 = vpop.permute.xlu0 %732
  %734 = vrot.lane.b32.xlu0 %v699, 64
  %v735 = vpop.permute.xlu0 %734
  %736 = vrot.lane.b32.xlu0 %v700, 64
  %v737 = vpop.permute.xlu0 %736
  %738 = vrot.lane.b32.xlu0 %v701, 64
  %v739 = vpop.permute.xlu0 %738
  %740 = vrot.lane.b32.xlu0 %v702, 64
  %v741 = vpop.permute.xlu0 %740
  %742 = vrot.lane.b32.xlu0 %v703, 64
  %v743 = vpop.permute.xlu0 %742
  %744 = vrot.lane.b32.xlu0 %v704, 64
  %v745 = vpop.permute.xlu0 %744
  %746 = vrot.lane.b32.xlu0 %v705, 64
  %v747 = vpop.permute.xlu0 %746
  %748 = vrot.lane.b32.xlu0 %v706, 64
  %v749 = vpop.permute.xlu0 %748
  %750 = vrot.lane.b32.xlu0 %v707, 64
  %v751 = vpop.permute.xlu0 %750
  %752 = vrot.lane.b32.xlu0 %v708, 64
  %v753 = vpop.permute.xlu0 %752
  %754 = vrot.lane.b32.xlu0 %v709, 64
  %v755 = vpop.permute.xlu0 %754
  %756 = vrot.lane.b32.xlu0 %v710, 64
  %v757 = vpop.permute.xlu0 %756
  %758 = vrot.lane.b32.xlu0 %v711, 64
  %v759 = vpop.permute.xlu0 %758
  %776 = vst.msk [vmem:[#allocation3 + $0x8] sm:$0xff] %vm453, %v729
  %777 = vst.msk [vmem:[#allocation3 + $0x20] sm:$0xff] %vm453, %v731
  %778 = vst.msk [vmem:[#allocation3 + $0x38] sm:$0xff] %vm453, %v733
  %779 = vst.msk [vmem:[#allocation3 + $0x50] sm:$0xff] %vm453, %v735
  %780 = vst.msk [vmem:[#allocation3 + $0x68] sm:$0xff] %vm453, %v737
  %781 = vst.msk [vmem:[#allocation3 + $0x80] sm:$0xff] %vm453, %v739
  %782 = vst.msk [vmem:[#allocation3 + $0x98] sm:$0xff] %vm453, %v741
  %783 = vst.msk [vmem:[#allocation3 + $0xb0] sm:$0xff] %vm453, %v743
  %784 = vst.msk [vmem:[#allocation3 + $0xc8] sm:$0xff] %vm453, %v745
  %785 = vst.msk [vmem:[#allocation3 + $0xe0] sm:$0xff] %vm453, %v747
  %786 = vst.msk [vmem:[#allocation3 + $0xf8] sm:$0xff] %vm453, %v749
  %787 = vst.msk [vmem:[#allocation3 + $0x110] sm:$0xff] %vm453, %v751
  %788 = vst.msk [vmem:[#allocation3 + $0x128] sm:$0xff] %vm453, %v753
  %789 = vst.msk [vmem:[#allocation3 + $0x140] sm:$0xff] %vm453, %v755
  %790 = vst.msk [vmem:[#allocation3 + $0x158] sm:$0xff] %vm453, %v757
  %791 = vst.msk [vmem:[#allocation3 + $0x170] sm:$0xff] %vm453, %v759
  %v792 = vld [vmem:[%s695 + $0x1] sm:$0xff]
  %v793 = vld [vmem:[%s695 + $0x11] sm:$0xff]
  %v794 = vld [vmem:[%s695 + $0x21] sm:$0xff]
  %v795 = vld [vmem:[%s695 + $0x31] sm:$0xff]
  %v796 = vld [vmem:[%s695 + $0x41] sm:$0xff]
  %v797 = vld [vmem:[%s695 + $0x51] sm:$0xff]
  %v798 = vld [vmem:[%s695 + $0x61] sm:$0xff]
  %v799 = vld [vmem:[%s695 + $0x71] sm:$0xff]
  %v800 = vld [vmem:[%s695 + $0xa1] sm:$0xff]
  %v801 = vld [vmem:[%s695 + $0xb1] sm:$0xff]
  %v802 = vld [vmem:[%s695 + $0xc1] sm:$0xff]
  %v803 = vld [vmem:[%s695 + $0xd1] sm:$0xff]
  %v804 = vld [vmem:[%s695 + $0xe1] sm:$0xff]
  %v805 = vld [vmem:[%s695 + $0xf1] sm:$0xff]
  %v806 = vld [vmem:[%s695 + $0x101] sm:$0xff]
  %v807 = vld [vmem:[%s695 + $0x111] sm:$0xff]
  %824 = vrot.lane.b32.xlu0 %v792, 96
  %v825 = vpop.permute.xlu0 %824
  %826 = vrot.lane.b32.xlu0 %v793, 96
  %v827 = vpop.permute.xlu0 %826
  %828 = vrot.lane.b32.xlu0 %v794, 96
  %v829 = vpop.permute.xlu0 %828
  %830 = vrot.lane.b32.xlu0 %v795, 96
  %v831 = vpop.permute.xlu0 %830
  %832 = vrot.lane.b32.xlu0 %v796, 96
  %v833 = vpop.permute.xlu0 %832
  %834 = vrot.lane.b32.xlu0 %v797, 96
  %v835 = vpop.permute.xlu0 %834
  %836 = vrot.lane.b32.xlu0 %v798, 96
  %v837 = vpop.permute.xlu0 %836
  %838 = vrot.lane.b32.xlu0 %v799, 96
  %v839 = vpop.permute.xlu0 %838
  %840 = vrot.lane.b32.xlu0 %v800, 96
  %v841 = vpop.permute.xlu0 %840
  %842 = vrot.lane.b32.xlu0 %v801, 96
  %v843 = vpop.permute.xlu0 %842
  %844 = vrot.lane.b32.xlu0 %v802, 96
  %v845 = vpop.permute.xlu0 %844
  %846 = vrot.lane.b32.xlu0 %v803, 96
  %v847 = vpop.permute.xlu0 %846
  %848 = vrot.lane.b32.xlu0 %v804, 96
  %v849 = vpop.permute.xlu0 %848
  %850 = vrot.lane.b32.xlu0 %v805, 96
  %v851 = vpop.permute.xlu0 %850
  %852 = vrot.lane.b32.xlu0 %v806, 96
  %v853 = vpop.permute.xlu0 %852
  %854 = vrot.lane.b32.xlu0 %v807, 96
  %v855 = vpop.permute.xlu0 %854
  %872 = vst.msk [vmem:[#allocation3 + $0x8] sm:$0xff] %vm550, %v825
  %873 = vst.msk [vmem:[#allocation3 + $0x20] sm:$0xff] %vm550, %v827
  %874 = vst.msk [vmem:[#allocation3 + $0x38] sm:$0xff] %vm550, %v829
  %875 = vst.msk [vmem:[#allocation3 + $0x50] sm:$0xff] %vm550, %v831
  %876 = vst.msk [vmem:[#allocation3 + $0x68] sm:$0xff] %vm550, %v833
  %877 = vst.msk [vmem:[#allocation3 + $0x80] sm:$0xff] %vm550, %v835
  %878 = vst.msk [vmem:[#allocation3 + $0x98] sm:$0xff] %vm550, %v837
  %879 = vst.msk [vmem:[#allocation3 + $0xb0] sm:$0xff] %vm550, %v839
  %880 = vst.msk [vmem:[#allocation3 + $0xc8] sm:$0xff] %vm550, %v841
  %881 = vst.msk [vmem:[#allocation3 + $0xe0] sm:$0xff] %vm550, %v843
  %882 = vst.msk [vmem:[#allocation3 + $0xf8] sm:$0xff] %vm550, %v845
  %883 = vst.msk [vmem:[#allocation3 + $0x110] sm:$0xff] %vm550, %v847
  %884 = vst.msk [vmem:[#allocation3 + $0x128] sm:$0xff] %vm550, %v849
  %885 = vst.msk [vmem:[#allocation3 + $0x140] sm:$0xff] %vm550, %v851
  %886 = vst.msk [vmem:[#allocation3 + $0x158] sm:$0xff] %vm550, %v853
  %887 = vst.msk [vmem:[#allocation3 + $0x170] sm:$0xff] %vm550, %v855
  %v888 = vld [vmem:[%s695 + $0x2] sm:$0xff]
  %v889 = vld [vmem:[%s695 + $0x12] sm:$0xff]
  %v890 = vld [vmem:[%s695 + $0x22] sm:$0xff]
  %v891 = vld [vmem:[%s695 + $0x32] sm:$0xff]
  %v892 = vld [vmem:[%s695 + $0x42] sm:$0xff]
  %v893 = vld [vmem:[%s695 + $0x52] sm:$0xff]
  %v894 = vld [vmem:[%s695 + $0x62] sm:$0xff]
  %v895 = vld [vmem:[%s695 + $0x72] sm:$0xff]
  %v896 = vld [vmem:[%s695 + $0xa2] sm:$0xff]
  %v897 = vld [vmem:[%s695 + $0xb2] sm:$0xff]
  %v898 = vld [vmem:[%s695 + $0xc2] sm:$0xff]
  %v899 = vld [vmem:[%s695 + $0xd2] sm:$0xff]
  %v900 = vld [vmem:[%s695 + $0xe2] sm:$0xff]
  %v901 = vld [vmem:[%s695 + $0xf2] sm:$0xff]
  %v902 = vld [vmem:[%s695 + $0x102] sm:$0xff]
  %v903 = vld [vmem:[%s695 + $0x112] sm:$0xff]
  %904 = vst.msk [vmem:[#allocation3 + $0x10] sm:$0xff] %vm26, %v888
  %905 = vst.msk [vmem:[#allocation3 + $0x28] sm:$0xff] %vm26, %v889
  %906 = vst.msk [vmem:[#allocation3 + $0x40] sm:$0xff] %vm26, %v890
  %907 = vst.msk [vmem:[#allocation3 + $0x58] sm:$0xff] %vm26, %v891
  %908 = vst.msk [vmem:[#allocation3 + $0x70] sm:$0xff] %vm26, %v892
  %909 = vst.msk [vmem:[#allocation3 + $0x88] sm:$0xff] %vm26, %v893
  %910 = vst.msk [vmem:[#allocation3 + $0xa0] sm:$0xff] %vm26, %v894
  %911 = vst.msk [vmem:[#allocation3 + $0xb8] sm:$0xff] %vm26, %v895
  %912 = vst.msk [vmem:[#allocation3 + $0xd0] sm:$0xff] %vm26, %v896
  %913 = vst.msk [vmem:[#allocation3 + $0xe8] sm:$0xff] %vm26, %v897
  %914 = vst.msk [vmem:[#allocation3 + $0x100] sm:$0xff] %vm26, %v898
  %915 = vst.msk [vmem:[#allocation3 + $0x118] sm:$0xff] %vm26, %v899
  %916 = vst.msk [vmem:[#allocation3 + $0x130] sm:$0xff] %vm26, %v900
  %917 = vst.msk [vmem:[#allocation3 + $0x148] sm:$0xff] %vm26, %v901
  %918 = vst.msk [vmem:[#allocation3 + $0x160] sm:$0xff] %vm26, %v902
  %919 = vst.msk [vmem:[#allocation3 + $0x178] sm:$0xff] %vm26, %v903
  %v920 = vld [vmem:[#allocation3] sm:$0xff]
  %v921 = vld [vmem:[#allocation3 + $0x8] sm:$0xff]
  %v922 = vld [vmem:[#allocation3 + $0x10] sm:$0xff]
  %v923 = vld [vmem:[#allocation3 + $0x18] sm:$0xff]
  %v924 = vld [vmem:[#allocation3 + $0x20] sm:$0xff]
  %v925 = vld [vmem:[#allocation3 + $0x28] sm:$0xff]
  %v926 = vld [vmem:[#allocation3 + $0x30] sm:$0xff]
  %v927 = vld [vmem:[#allocation3 + $0x38] sm:$0xff]
  %v928 = vld [vmem:[#allocation3 + $0x40] sm:$0xff]
  %v929 = vld [vmem:[#allocation3 + $0x48] sm:$0xff]
  %v930 = vld [vmem:[#allocation3 + $0x50] sm:$0xff]
  %v931 = vld [vmem:[#allocation3 + $0x58] sm:$0xff]
  %v932 = vld [vmem:[#allocation3 + $0x60] sm:$0xff]
  %v933 = vld [vmem:[#allocation3 + $0x68] sm:$0xff]
  %v934 = vld [vmem:[#allocation3 + $0x70] sm:$0xff]
  %v935 = vld [vmem:[#allocation3 + $0x78] sm:$0xff]
  %v936 = vld [vmem:[#allocation3 + $0x80] sm:$0xff]
  %v937 = vld [vmem:[#allocation3 + $0x88] sm:$0xff]
  %v938 = vld [vmem:[#allocation3 + $0x90] sm:$0xff]
  %v939 = vld [vmem:[#allocation3 + $0x98] sm:$0xff]
  %v940 = vld [vmem:[#allocation3 + $0xa0] sm:$0xff]
  %v941 = vld [vmem:[#allocation3 + $0xa8] sm:$0xff]
  %v942 = vld [vmem:[#allocation3 + $0xb0] sm:$0xff]
  %v943 = vld [vmem:[#allocation3 + $0xb8] sm:$0xff]
  %v944 = vld [vmem:[#allocation3 + $0xc0] sm:$0xff]
  %v945 = vld [vmem:[#allocation3 + $0xc8] sm:$0xff]
  %v946 = vld [vmem:[#allocation3 + $0xd0] sm:$0xff]
  %v947 = vld [vmem:[#allocation3 + $0xd8] sm:$0xff]
  %v948 = vld [vmem:[#allocation3 + $0xe0] sm:$0xff]
  %v949 = vld [vmem:[#allocation3 + $0xe8] sm:$0xff]
  %v950 = vld [vmem:[#allocation3 + $0xf0] sm:$0xff]
  %v951 = vld [vmem:[#allocation3 + $0xf8] sm:$0xff]
  %v952 = vld [vmem:[#allocation3 + $0x100] sm:$0xff]
  %v953 = vld [vmem:[#allocation3 + $0x108] sm:$0xff]
  %v954 = vld [vmem:[#allocation3 + $0x110] sm:$0xff]
  %v955 = vld [vmem:[#allocation3 + $0x118] sm:$0xff]
  %v956 = vld [vmem:[#allocation3 + $0x120] sm:$0xff]
  %v957 = vld [vmem:[#allocation3 + $0x128] sm:$0xff]
  %v958 = vld [vmem:[#allocation3 + $0x130] sm:$0xff]
  %v959 = vld [vmem:[#allocation3 + $0x138] sm:$0xff]
  %v960 = vld [vmem:[#allocation3 + $0x140] sm:$0xff]
  %v961 = vld [vmem:[#allocation3 + $0x148] sm:$0xff]
  %v962 = vld [vmem:[#allocation3 + $0x150] sm:$0xff]
  %v963 = vld [vmem:[#allocation3 + $0x158] sm:$0xff]
  %v964 = vld [vmem:[#allocation3 + $0x160] sm:$0xff]
  %v965 = vld [vmem:[#allocation3 + $0x168] sm:$0xff]
  %v966 = vld [vmem:[#allocation3 + $0x170] sm:$0xff]
  %v967 = vld [vmem:[#allocation3 + $0x178] sm:$0xff]
  %v968 = vld [vmem:[%s3] sm:$0xff]
  %v969 = vld [vmem:[%s3 + $0x8] sm:$0xff]
  %v970 = vld [vmem:[%s3 + $0x10] sm:$0xff]
  %v971 = vld [vmem:[%s3 + $0x18] sm:$0xff]
  %v972 = vld [vmem:[%s3 + $0x20] sm:$0xff]
  %v973 = vld [vmem:[%s3 + $0x28] sm:$0xff]
  %v974 = vld [vmem:[%s3 + $0x30] sm:$0xff]
  %v975 = vld [vmem:[%s3 + $0x38] sm:$0xff]
  %v976 = vld [vmem:[%s3 + $0x40] sm:$0xff]
  %v977 = vld [vmem:[%s3 + $0x48] sm:$0xff]
  %v978 = vld [vmem:[%s3 + $0x50] sm:$0xff]
  %v979 = vld [vmem:[%s3 + $0x58] sm:$0xff]
  %v980 = vld [vmem:[%s3 + $0x60] sm:$0xff]
  %v981 = vld [vmem:[%s3 + $0x68] sm:$0xff]
  %v982 = vld [vmem:[%s3 + $0x70] sm:$0xff]
  %v983 = vld [vmem:[%s3 + $0x78] sm:$0xff]
  %v984 = vld [vmem:[%s3 + $0x80] sm:$0xff]
  %v985 = vld [vmem:[%s3 + $0x88] sm:$0xff]
  %v986 = vld [vmem:[%s3 + $0x90] sm:$0xff]
  %v987 = vld [vmem:[%s3 + $0x98] sm:$0xff]
  %v988 = vld [vmem:[%s3 + $0xa0] sm:$0xff]
  %v989 = vld [vmem:[%s3 + $0xa8] sm:$0xff]
  %v990 = vld [vmem:[%s3 + $0xb0] sm:$0xff]
  %v991 = vld [vmem:[%s3 + $0xb8] sm:$0xff]
  %v992 = vld [vmem:[%s3 + $0xc0] sm:$0xff]
  %v993 = vld [vmem:[%s3 + $0xc8] sm:$0xff]
  %v994 = vld [vmem:[%s3 + $0xd0] sm:$0xff]
  %v995 = vld [vmem:[%s3 + $0xd8] sm:$0xff]
  %v996 = vld [vmem:[%s3 + $0xe0] sm:$0xff]
  %v997 = vld [vmem:[%s3 + $0xe8] sm:$0xff]
  %v998 = vld [vmem:[%s3 + $0xf0] sm:$0xff]
  %v999 = vld [vmem:[%s3 + $0xf8] sm:$0xff]
  %v1000 = vld [vmem:[%s3 + $0x100] sm:$0xff]
  %v1001 = vld [vmem:[%s3 + $0x108] sm:$0xff]
  %v1002 = vld [vmem:[%s3 + $0x110] sm:$0xff]
  %v1003 = vld [vmem:[%s3 + $0x118] sm:$0xff]
  %v1004 = vld [vmem:[%s4] sm:$0x1]
  %v1006 = vperm.slane %v1004, 0
  %v1009 = vsel %vm26, %v922, 0
  %v1012 = vsel %vm26, %v925, 0
  %v1015 = vsel %vm26, %v928, 0
  %v1018 = vsel %vm26, %v931, 0
  %v1021 = vsel %vm26, %v934, 0
  %v1024 = vsel %vm26, %v937, 0
  %v1027 = vsel %vm26, %v940, 0
  %v1030 = vsel %vm26, %v943, 0
  %v1033 = vsel %vm26, %v946, 0
  %v1036 = vsel %vm26, %v949, 0
  %v1039 = vsel %vm26, %v952, 0
  %v1042 = vsel %vm26, %v955, 0
  %v1045 = vsel %vm26, %v958, 0
  %v1048 = vsel %vm26, %v961, 0
  %v1051 = vsel %vm26, %v964, 0
  %v1054 = vsel %vm26, %v967, 0
  %1056 = vmatpush.msra.mxu0 %v983
  %1057 = vmatpush.msra.mxu0 %v982
  %1058 = vmatpush.msra.mxu0 %v981
  %1059 = vmatpush.msra.mxu0 %v980
  %1060 = vmatpush.msra.mxu0 %v979
  %1061 = vmatpush.msra.mxu0 %v978
  %1062 = vmatpush.msra.mxu0 %v977
  %1063 = vmatpush.msra.mxu0 %v976
  %1064 = vmatpush.msra.mxu0 %v975
  %1065 = vmatpush.msra.mxu0 %v974
  %1066 = vmatpush.msra.mxu0 %v973
  %1067 = vmatpush.msra.mxu0 %v972
  %1068 = vmatpush.msra.mxu0 %v971
  %1069 = vmatpush.msra.mxu0 %v970
  %1070 = vmatpush.msra.mxu0 %v969
  %1071 = vmatpush.msra.mxu0 %v968
  %1072 = vmatmul.f32.gmra.mxu0 %v920
  %v1073 = vpop.f32.mrf.mxu0
  %v1074 = vadd.f32 %v1006, %v1073
  %1075 = vmatmul.f32.gmra.mxu0 %v923
  %v1076 = vpop.f32.mrf.mxu0
  %v1077 = vadd.f32 %v1006, %v1076
  %1078 = vmatmul.f32.gmra.mxu0 %v926
  %v1079 = vpop.f32.mrf.mxu0
  %v1080 = vadd.f32 %v1006, %v1079
  %1081 = vmatmul.f32.gmra.mxu0 %v929
  %v1082 = vpop.f32.mrf.mxu0
  %v1083 = vadd.f32 %v1006, %v1082
  %1084 = vmatmul.f32.gmra.mxu0 %v932
  %v1085 = vpop.f32.mrf.mxu0
  %v1086 = vadd.f32 %v1006, %v1085
  %1087 = vmatmul.f32.gmra.mxu0 %v935
  %v1088 = vpop.f32.mrf.mxu0
  %v1089 = vadd.f32 %v1006, %v1088
  %1090 = vmatmul.f32.gmra.mxu0 %v938
  %v1091 = vpop.f32.mrf.mxu0
  %v1092 = vadd.f32 %v1006, %v1091
  %1093 = vmatmul.f32.gmra.mxu0 %v941
  %v1094 = vpop.f32.mrf.mxu0
  %v1095 = vadd.f32 %v1006, %v1094
  %1096 = vmatmul.f32.gmra.mxu0 %v944
  %v1097 = vpop.f32.mrf.mxu0
  %v1098 = vadd.f32 %v1006, %v1097
  %1099 = vmatmul.f32.gmra.mxu0 %v947
  %v1100 = vpop.f32.mrf.mxu0
  %v1101 = vadd.f32 %v1006, %v1100
  %1102 = vmatmul.f32.gmra.mxu0 %v950
  %v1103 = vpop.f32.mrf.mxu0
  %v1104 = vadd.f32 %v1006, %v1103
  %1105 = vmatmul.f32.gmra.mxu0 %v953
  %v1106 = vpop.f32.mrf.mxu0
  %v1107 = vadd.f32 %v1006, %v1106
  %1108 = vmatmul.f32.gmra.mxu0 %v956
  %v1109 = vpop.f32.mrf.mxu0
  %v1110 = vadd.f32 %v1006, %v1109
  %1111 = vmatmul.f32.gmra.mxu0 %v959
  %v1112 = vpop.f32.mrf.mxu0
  %v1113 = vadd.f32 %v1006, %v1112
  %1114 = vmatmul.f32.gmra.mxu0 %v962
  %v1115 = vpop.f32.mrf.mxu0
  %v1116 = vadd.f32 %v1006, %v1115
  %1117 = vmatmul.f32.gmra.mxu0 %v965
  %v1118 = vpop.f32.mrf.mxu0
  %v1119 = vadd.f32 %v1006, %v1118
  %1120 = vdwg.mxu0
  %1121 = vmatpush.msra.mxu0 %v999
  %1122 = vmatpush.msra.mxu0 %v998
  %1123 = vmatpush.msra.mxu0 %v997
  %1124 = vmatpush.msra.mxu0 %v996
  %1125 = vmatpush.msra.mxu0 %v995
  %1126 = vmatpush.msra.mxu0 %v994
  %1127 = vmatpush.msra.mxu0 %v993
  %1128 = vmatpush.msra.mxu0 %v992
  %1129 = vmatpush.msra.mxu0 %v991
  %1130 = vmatpush.msra.mxu0 %v990
  %1131 = vmatpush.msra.mxu0 %v989
  %1132 = vmatpush.msra.mxu0 %v988
  %1133 = vmatpush.msra.mxu0 %v987
  %1134 = vmatpush.msra.mxu0 %v986
  %1135 = vmatpush.msra.mxu0 %v985
  %1136 = vmatpush.msra.mxu0 %v984
  %1137 = vmatmul.f32.gmra.mxu0 %v921
  %v1138 = vpop.f32.mrf.mxu0
  %v1139 = vadd.f32 %v1074, %v1138
  %1140 = vmatmul.f32.gmra.mxu0 %v924
  %v1141 = vpop.f32.mrf.mxu0
  %v1142 = vadd.f32 %v1077, %v1141
  %1143 = vmatmul.f32.gmra.mxu0 %v927
  %v1144 = vpop.f32.mrf.mxu0
  %v1145 = vadd.f32 %v1080, %v1144
  %1146 = vmatmul.f32.gmra.mxu0 %v930
  %v1147 = vpop.f32.mrf.mxu0
  %v1148 = vadd.f32 %v1083, %v1147
  %1149 = vmatmul.f32.gmra.mxu0 %v933
  %v1150 = vpop.f32.mrf.mxu0
  %v1151 = vadd.f32 %v1086, %v1150
  %1152 = vmatmul.f32.gmra.mxu0 %v936
  %v1153 = vpop.f32.mrf.mxu0
  %v1154 = vadd.f32 %v1089, %v1153
  %1155 = vmatmul.f32.gmra.mxu0 %v939
  %v1156 = vpop.f32.mrf.mxu0
  %v1157 = vadd.f32 %v1092, %v1156
  %1158 = vmatmul.f32.gmra.mxu0 %v942
  %v1159 = vpop.f32.mrf.mxu0
  %v1160 = vadd.f32 %v1095, %v1159
  %1161 = vmatmul.f32.gmra.mxu0 %v945
  %v1162 = vpop.f32.mrf.mxu0
  %v1163 = vadd.f32 %v1098, %v1162
  %1164 = vmatmul.f32.gmra.mxu0 %v948
  %v1165 = vpop.f32.mrf.mxu0
  %v1166 = vadd.f32 %v1101, %v1165
  %1167 = vmatmul.f32.gmra.mxu0 %v951
  %v1168 = vpop.f32.mrf.mxu0
  %v1169 = vadd.f32 %v1104, %v1168
  %1170 = vmatmul.f32.gmra.mxu0 %v954
  %v1171 = vpop.f32.mrf.mxu0
  %v1172 = vadd.f32 %v1107, %v1171
  %1173 = vmatmul.f32.gmra.mxu0 %v957
  %v1174 = vpop.f32.mrf.mxu0
  %v1175 = vadd.f32 %v1110, %v1174
  %1176 = vmatmul.f32.gmra.mxu0 %v960
  %v1177 = vpop.f32.mrf.mxu0
  %v1178 = vadd.f32 %v1113, %v1177
  %1179 = vmatmul.f32.gmra.mxu0 %v963
  %v1180 = vpop.f32.mrf.mxu0
  %v1181 = vadd.f32 %v1116, %v1180
  %1182 = vmatmul.f32.gmra.mxu0 %v966
  %v1183 = vpop.f32.mrf.mxu0
  %v1184 = vadd.f32 %v1119, %v1183
  %1185 = vdwg.mxu0
  %1186 = vmatpush.msra.mxu0 0.0
  %1187 = vmatpush.msra.mxu0 0.0
  %1188 = vmatpush.msra.mxu0 0.0
  %1189 = vmatpush.msra.mxu0 0.0
  %1190 = vmatpush.msra.mxu0 0.0
  %1191 = vmatpush.msra.mxu0 0.0
  %1192 = vmatpush.msra.mxu0 0.0
  %1193 = vmatpush.msra.mxu0 0.0
  %1194 = vmatpush.msra.mxu0 0.0
  %1195 = vmatpush.msra.mxu0 0.0
  %1196 = vmatpush.msra.mxu0 0.0
  %1197 = vmatpush.msra.mxu0 0.0
  %1198 = vmatpush.msra.mxu0 %v1003
  %1199 = vmatpush.msra.mxu0 %v1002
  %1200 = vmatpush.msra.mxu0 %v1001
  %1201 = vmatpush.msra.mxu0 %v1000
  %1202 = vmatmul.f32.gmra.mxu0 %v1009
  %v1203 = vpop.f32.mrf.mxu0
  %v1204 = vadd.f32 %v1139, %v1203
  %1205 = vmatmul.f32.gmra.mxu0 %v1012
  %v1206 = vpop.f32.mrf.mxu0
  %v1207 = vadd.f32 %v1142, %v1206
  %1208 = vmatmul.f32.gmra.mxu0 %v1015
  %v1209 = vpop.f32.mrf.mxu0
  %v1210 = vadd.f32 %v1145, %v1209
  %1211 = vmatmul.f32.gmra.mxu0 %v1018
  %v1212 = vpop.f32.mrf.mxu0
  %v1213 = vadd.f32 %v1148, %v1212
  %1214 = vmatmul.f32.gmra.mxu0 %v1021
  %v1215 = vpop.f32.mrf.mxu0
  %v1216 = vadd.f32 %v1151, %v1215
  %1217 = vmatmul.f32.gmra.mxu0 %v1024
  %v1218 = vpop.f32.mrf.mxu0
  %v1219 = vadd.f32 %v1154, %v1218
  %1220 = vmatmul.f32.gmra.mxu0 %v1027
  %v1221 = vpop.f32.mrf.mxu0
  %v1222 = vadd.f32 %v1157, %v1221
  %1223 = vmatmul.f32.gmra.mxu0 %v1030
  %v1224 = vpop.f32.mrf.mxu0
  %v1225 = vadd.f32 %v1160, %v1224
  %1226 = vmatmul.f32.gmra.mxu0 %v1033
  %v1227 = vpop.f32.mrf.mxu0
  %v1228 = vadd.f32 %v1163, %v1227
  %1229 = vmatmul.f32.gmra.mxu0 %v1036
  %v1230 = vpop.f32.mrf.mxu0
  %v1231 = vadd.f32 %v1166, %v1230
  %1232 = vmatmul.f32.gmra.mxu0 %v1039
  %v1233 = vpop.f32.mrf.mxu0
  %v1234 = vadd.f32 %v1169, %v1233
  %1235 = vmatmul.f32.gmra.mxu0 %v1042
  %v1236 = vpop.f32.mrf.mxu0
  %v1237 = vadd.f32 %v1172, %v1236
  %1238 = vmatmul.f32.gmra.mxu0 %v1045
  %v1239 = vpop.f32.mrf.mxu0
  %v1240 = vadd.f32 %v1175, %v1239
  %1241 = vmatmul.f32.gmra.mxu0 %v1048
  %v1242 = vpop.f32.mrf.mxu0
  %v1243 = vadd.f32 %v1178, %v1242
  %1244 = vmatmul.f32.gmra.mxu0 %v1051
  %v1245 = vpop.f32.mrf.mxu0
  %v1246 = vadd.f32 %v1181, %v1245
  %1247 = vmatmul.f32.gmra.mxu0 %v1054
  %v1248 = vpop.f32.mrf.mxu0
  %v1249 = vadd.f32 %v1184, %v1248
  %1250 = vdwg.mxu0
  %vm1251 = vcmp.ge.f32.partialorder %v1204, 0.0
  %vm1252 = vcmp.ge.f32.partialorder %v1207, 0.0
  %vm1253 = vcmp.ge.f32.partialorder %v1210, 0.0
  %vm1254 = vcmp.ge.f32.partialorder %v1213, 0.0
  %vm1255 = vcmp.ge.f32.partialorder %v1216, 0.0
  %vm1256 = vcmp.ge.f32.partialorder %v1219, 0.0
  %vm1257 = vcmp.ge.f32.partialorder %v1222, 0.0
  %vm1258 = vcmp.ge.f32.partialorder %v1225, 0.0
  %vm1259 = vcmp.ge.f32.partialorder %v1228, 0.0
  %vm1260 = vcmp.ge.f32.partialorder %v1231, 0.0
  %vm1261 = vcmp.ge.f32.partialorder %v1234, 0.0
  %vm1262 = vcmp.ge.f32.partialorder %v1237, 0.0
  %vm1263 = vcmp.ge.f32.partialorder %v1240, 0.0
  %vm1264 = vcmp.ge.f32.partialorder %v1243, 0.0
  %vm1265 = vcmp.ge.f32.partialorder %v1246, 0.0
  %vm1266 = vcmp.ge.f32.partialorder %v1249, 0.0
  %v1267 = vmul.f32 %v1204, 0.1
  %v1268 = vmul.f32 %v1207, 0.1
  %v1269 = vmul.f32 %v1210, 0.1
  %v1270 = vmul.f32 %v1213, 0.1
  %v1271 = vmul.f32 %v1216, 0.1
  %v1272 = vmul.f32 %v1219, 0.1
  %v1273 = vmul.f32 %v1222, 0.1
  %v1274 = vmul.f32 %v1225, 0.1
  %v1275 = vmul.f32 %v1228, 0.1
  %v1276 = vmul.f32 %v1231, 0.1
  %v1277 = vmul.f32 %v1234, 0.1
  %v1278 = vmul.f32 %v1237, 0.1
  %v1279 = vmul.f32 %v1240, 0.1
  %v1280 = vmul.f32 %v1243, 0.1
  %v1281 = vmul.f32 %v1246, 0.1
  %v1282 = vmul.f32 %v1249, 0.1
  %v1283 = vsel %vm1251, %v1204, %v1267
  %v1284 = vsel %vm1252, %v1207, %v1268
  %v1285 = vsel %vm1253, %v1210, %v1269
  %v1286 = vsel %vm1254, %v1213, %v1270
  %v1287 = vsel %vm1255, %v1216, %v1271
  %v1288 = vsel %vm1256, %v1219, %v1272
  %v1289 = vsel %vm1257, %v1222, %v1273
  %v1290 = vsel %vm1258, %v1225, %v1274
  %v1291 = vsel %vm1259, %v1228, %v1275
  %v1292 = vsel %vm1260, %v1231, %v1276
  %v1293 = vsel %vm1261, %v1234, %v1277
  %v1294 = vsel %vm1262, %v1237, %v1278
  %v1295 = vsel %vm1263, %v1240, %v1279
  %v1296 = vsel %vm1264, %v1243, %v1280
  %v1297 = vsel %vm1265, %v1246, %v1281
  %v1298 = vsel %vm1266, %v1249, %v1282
  %v1299 = vld [vmem:[%s5] sm:$0xff]
  %v1300 = vld [vmem:[%s5 + $0x8] sm:$0xff]
  %v1301 = vld [vmem:[%s5 + $0x10] sm:$0xff]
  %v1302 = vld [vmem:[%s5 + $0x18] sm:$0xff]
  %v1303 = vld [vmem:[%s6] sm:$0x1]
  %v1305 = vperm.slane %v1303, 0
  %v1308 = vsel %vm26, %v1283, 0
  %v1311 = vsel %vm26, %v1284, 0
  %v1314 = vsel %vm26, %v1285, 0
  %v1317 = vsel %vm26, %v1286, 0
  %v1320 = vsel %vm26, %v1287, 0
  %v1323 = vsel %vm26, %v1288, 0
  %v1326 = vsel %vm26, %v1289, 0
  %v1329 = vsel %vm26, %v1290, 0
  %v1332 = vsel %vm26, %v1291, 0
  %v1335 = vsel %vm26, %v1292, 0
  %v1338 = vsel %vm26, %v1293, 0
  %v1341 = vsel %vm26, %v1294, 0
  %v1344 = vsel %vm26, %v1295, 0
  %v1347 = vsel %vm26, %v1296, 0
  %v1350 = vsel %vm26, %v1297, 0
  %v1353 = vsel %vm26, %v1298, 0
  %1355 = vmatpush.msra.mxu0 0.0
  %1356 = vmatpush.msra.mxu0 0.0
  %1357 = vmatpush.msra.mxu0 0.0
  %1358 = vmatpush.msra.mxu0 0.0
  %1359 = vmatpush.msra.mxu0 0.0
  %1360 = vmatpush.msra.mxu0 0.0
  %1361 = vmatpush.msra.mxu0 0.0
  %1362 = vmatpush.msra.mxu0 0.0
  %1363 = vmatpush.msra.mxu0 0.0
  %1364 = vmatpush.msra.mxu0 0.0
  %1365 = vmatpush.msra.mxu0 0.0
  %1366 = vmatpush.msra.mxu0 0.0
  %1367 = vmatpush.msra.mxu0 %v1302
  %1368 = vmatpush.msra.mxu0 %v1301
  %1369 = vmatpush.msra.mxu0 %v1300
  %1370 = vmatpush.msra.mxu0 %v1299
  %1371 = vmatmul.f32.gmra.mxu0 %v1308
  %v1372 = vpop.f32.mrf.mxu0
  %v1373 = vadd.f32 %v1305, %v1372
  %1374 = vmatmul.f32.gmra.mxu0 %v1311
  %v1375 = vpop.f32.mrf.mxu0
  %v1376 = vadd.f32 %v1305, %v1375
  %1377 = vmatmul.f32.gmra.mxu0 %v1314
  %v1378 = vpop.f32.mrf.mxu0
  %v1379 = vadd.f32 %v1305, %v1378
  %1380 = vmatmul.f32.gmra.mxu0 %v1317
  %v1381 = vpop.f32.mrf.mxu0
  %v1382 = vadd.f32 %v1305, %v1381
  %1383 = vmatmul.f32.gmra.mxu0 %v1320
  %v1384 = vpop.f32.mrf.mxu0
  %v1385 = vadd.f32 %v1305, %v1384
  %1386 = vmatmul.f32.gmra.mxu0 %v1323
  %v1387 = vpop.f32.mrf.mxu0
  %v1388 = vadd.f32 %v1305, %v1387
  %1389 = vmatmul.f32.gmra.mxu0 %v1326
  %v1390 = vpop.f32.mrf.mxu0
  %v1391 = vadd.f32 %v1305, %v1390
  %1392 = vmatmul.f32.gmra.mxu0 %v1329
  %v1393 = vpop.f32.mrf.mxu0
  %v1394 = vadd.f32 %v1305, %v1393
  %1395 = vmatmul.f32.gmra.mxu0 %v1332
  %v1396 = vpop.f32.mrf.mxu0
  %v1397 = vadd.f32 %v1305, %v1396
  %1398 = vmatmul.f32.gmra.mxu0 %v1335
  %v1399 = vpop.f32.mrf.mxu0
  %v1400 = vadd.f32 %v1305, %v1399
  %1401 = vmatmul.f32.gmra.mxu0 %v1338
  %v1402 = vpop.f32.mrf.mxu0
  %v1403 = vadd.f32 %v1305, %v1402
  %1404 = vmatmul.f32.gmra.mxu0 %v1341
  %v1405 = vpop.f32.mrf.mxu0
  %v1406 = vadd.f32 %v1305, %v1405
  %1407 = vmatmul.f32.gmra.mxu0 %v1344
  %v1408 = vpop.f32.mrf.mxu0
  %v1409 = vadd.f32 %v1305, %v1408
  %1410 = vmatmul.f32.gmra.mxu0 %v1347
  %v1411 = vpop.f32.mrf.mxu0
  %v1412 = vadd.f32 %v1305, %v1411
  %1413 = vmatmul.f32.gmra.mxu0 %v1350
  %v1414 = vpop.f32.mrf.mxu0
  %v1415 = vadd.f32 %v1305, %v1414
  %1416 = vmatmul.f32.gmra.mxu0 %v1353
  %v1417 = vpop.f32.mrf.mxu0
  %v1418 = vadd.f32 %v1305, %v1417
  %1419 = vdwg.mxu0
  %v1420 = vadd.f32 %v1373, %v78
  %v1421 = vadd.f32 %v1376, %v79
  %v1422 = vadd.f32 %v1379, %v80
  %v1423 = vadd.f32 %v1382, %v81
  %v1424 = vadd.f32 %v1385, %v82
  %v1425 = vadd.f32 %v1388, %v83
  %v1426 = vadd.f32 %v1391, %v84
  %v1427 = vadd.f32 %v1394, %v85
  %v1428 = vadd.f32 %v1397, %v86
  %v1429 = vadd.f32 %v1400, %v87
  %v1430 = vadd.f32 %v1403, %v88
  %v1431 = vadd.f32 %v1406, %v89
  %v1432 = vadd.f32 %v1409, %v90
  %v1433 = vadd.f32 %v1412, %v91
  %v1434 = vadd.f32 %v1415, %v92
  %v1435 = vadd.f32 %v1418, %v93
  %vm1436 = vcmp.ge.f32.partialorder %v1420, 0.0
  %vm1437 = vcmp.ge.f32.partialorder %v1421, 0.0
  %vm1438 = vcmp.ge.f32.partialorder %v1422, 0.0
  %vm1439 = vcmp.ge.f32.partialorder %v1423, 0.0
  %vm1440 = vcmp.ge.f32.partialorder %v1424, 0.0
  %vm1441 = vcmp.ge.f32.partialorder %v1425, 0.0
  %vm1442 = vcmp.ge.f32.partialorder %v1426, 0.0
  %vm1443 = vcmp.ge.f32.partialorder %v1427, 0.0
  %vm1444 = vcmp.ge.f32.partialorder %v1428, 0.0
  %vm1445 = vcmp.ge.f32.partialorder %v1429, 0.0
  %vm1446 = vcmp.ge.f32.partialorder %v1430, 0.0
  %vm1447 = vcmp.ge.f32.partialorder %v1431, 0.0
  %vm1448 = vcmp.ge.f32.partialorder %v1432, 0.0
  %vm1449 = vcmp.ge.f32.partialorder %v1433, 0.0
  %vm1450 = vcmp.ge.f32.partialorder %v1434, 0.0
  %vm1451 = vcmp.ge.f32.partialorder %v1435, 0.0
  %v1452 = vmul.f32 %v1420, 0.1
  %v1453 = vmul.f32 %v1421, 0.1
  %v1454 = vmul.f32 %v1422, 0.1
  %v1455 = vmul.f32 %v1423, 0.1
  %v1456 = vmul.f32 %v1424, 0.1
  %v1457 = vmul.f32 %v1425, 0.1
  %v1458 = vmul.f32 %v1426, 0.1
  %v1459 = vmul.f32 %v1427, 0.1
  %v1460 = vmul.f32 %v1428, 0.1
  %v1461 = vmul.f32 %v1429, 0.1
  %v1462 = vmul.f32 %v1430, 0.1
  %v1463 = vmul.f32 %v1431, 0.1
  %v1464 = vmul.f32 %v1432, 0.1
  %v1465 = vmul.f32 %v1433, 0.1
  %v1466 = vmul.f32 %v1434, 0.1
  %v1467 = vmul.f32 %v1435, 0.1
  %v1468 = vsel %vm1436, %v1420, %v1452
  %v1469 = vsel %vm1437, %v1421, %v1453
  %v1470 = vsel %vm1438, %v1422, %v1454
  %v1471 = vsel %vm1439, %v1423, %v1455
  %v1472 = vsel %vm1440, %v1424, %v1456
  %v1473 = vsel %vm1441, %v1425, %v1457
  %v1474 = vsel %vm1442, %v1426, %v1458
  %v1475 = vsel %vm1443, %v1427, %v1459
  %v1476 = vsel %vm1444, %v1428, %v1460
  %v1477 = vsel %vm1445, %v1429, %v1461
  %v1478 = vsel %vm1446, %v1430, %v1462
  %v1479 = vsel %vm1447, %v1431, %v1463
  %v1480 = vsel %vm1448, %v1432, %v1464
  %v1481 = vsel %vm1449, %v1433, %v1465
  %v1482 = vsel %vm1450, %v1434, %v1466
  %v1483 = vsel %vm1451, %v1435, %v1467
  %1484 = vst [vmem:[%s7] sm:$0xff] %v1468
  %1485 = vst [vmem:[%s7 + $0x8] sm:$0xff] %v1469
  %1486 = vst [vmem:[%s7 + $0x10] sm:$0xff] %v1470
  %1487 = vst [vmem:[%s7 + $0x18] sm:$0xff] %v1471
  %1488 = vst [vmem:[%s7 + $0x20] sm:$0xff] %v1472
  %1489 = vst [vmem:[%s7 + $0x28] sm:$0xff] %v1473
  %1490 = vst [vmem:[%s7 + $0x30] sm:$0xff] %v1474
  %1491 = vst [vmem:[%s7 + $0x38] sm:$0xff] %v1475
  %1492 = vst [vmem:[%s7 + $0x40] sm:$0xff] %v1476
  %1493 = vst [vmem:[%s7 + $0x48] sm:$0xff] %v1477
  %1494 = vst [vmem:[%s7 + $0x50] sm:$0xff] %v1478
  %1495 = vst [vmem:[%s7 + $0x58] sm:$0xff] %v1479
  %1496 = vst [vmem:[%s7 + $0x60] sm:$0xff] %v1480
  %1497 = vst [vmem:[%s7 + $0x68] sm:$0xff] %v1481
  %1498 = vst [vmem:[%s7 + $0x70] sm:$0xff] %v1482
  %1499 = vst [vmem:[%s7 + $0x78] sm:$0xff] %v1483
  // Predicated region
  $region30: #{bottleneck_forward.1} parent=0 // pred_check
    _
  $region31: #{bottleneck_forward.1} parent=0 // pred_check_branch
    %1501 = sbr.rel (0) target = $region33
  $region32: #{bottleneck_forward.1} parent=0 // pred_region
    _
  $region33: #{bottleneck_forward.1} parent=0 // pred_fallthru
    _
  // Predicated region
  $region34: #{bottleneck_forward.1} parent=0 // pred_check
    _
  $region35: #{bottleneck_forward.1} parent=0 // pred_check_branch
    %1503 = sbr.rel (0) target = $region37
  $region36: #{bottleneck_forward.1} parent=0 // pred_region
    _
  $region37: #{bottleneck_forward.1} parent=0 // pred_fallthru
    _

</llo_original>
